<compile_context>
chip_gen: v7x
topology: tpu7x:2x2x1
jax: 0.10.0
libtpu: 0.0.40
codegen_flags: <defaults>
</compile_context>

<pallas_src>
import functools

import jax
import jax.numpy as jnp
from jax.experimental import pallas as pl
from jax.experimental.pallas import tpu as pltpu


EPS = 1e-5

# Column layout of the packed per-layer vector params (rows padded to PAD):
_COL_GN1_G, _COL_GN1_B, _COL_B1 = 0, 1, 2
_COL_DW0, _COL_DW1, _COL_DW2, _COL_DWB = 3, 4, 5, 6
_COL_GN2_G, _COL_GN2_B, _COL_B2 = 7, 8, 9
_N_COLS = 10


def conv_module_kernel(x_ref, w1_ref, w2_ref, vp_ref, fc1_ref, fc2_ref, out_ref,
                       *, depth, C, H, R, T):
    """Full ConvolutionModule forward for one batch element, (C, T) resident in VMEM."""
    x = x_ref[...]                                              # (C, T) f32

    # ------------- constants hoisted once, reused by every layer -------------
    t_idx = jax.lax.broadcasted_iota(jnp.int32, (1, T), 1)
    not_first = (t_idx != 0).astype(jnp.float32)                # kill wrapped col t==0
    not_last = (t_idx != T - 1).astype(jnp.float32)             # kill wrapped col t==T-1

    def shift_r(y):
        # y[t-1] at position t; zero at t==0 (== Conv1d zero padding).
        return pltpu.roll(y, 1, axis=1) * not_first

    def shift_l(y):
        # y[t+1] at position t; zero at t==T-1 (negative shift illegal -> T-1).
        return pltpu.roll(y, T - 1, axis=1) * not_last

    def wmm(w16, act):
        # MXU matmul: bf16 operands, f32 accumulate.
        return jnp.dot(w16, act.astype(jnp.bfloat16),
                       preferred_element_type=jnp.float32)

    def group_norm(y, gamma, beta, n_rows):
        # GroupNorm(1, n_rows): stats over the whole (n_rows, T) block, all f32.
        inv_n = 1.0 / float(n_rows * T)
        m = jnp.sum(jnp.sum(y, axis=1, keepdims=True), axis=0, keepdims=True) * inv_n
        yc = y - m
        v = jnp.sum(jnp.sum(yc * yc, axis=1, keepdims=True), axis=0, keepdims=True) * inv_n
        scale = jax.lax.rsqrt(v + EPS) * gamma                  # fold gamma into rsqrt bcast
        return yc * scale + beta

    # Shared attention params (tiny N=1 matmuls -> keep f32).
    fc1 = fc1_ref[...]                                          # (R, C+1)
    fc2 = fc2_ref[...]                                          # (C, R+1)
    fc1_w, fc1_b = fc1[:, :C], fc1[:, C:C + 1]
    fc2_w, fc2_b = fc2[:, :R], fc2[:, R:R + 1]

    for d in range(depth):                   # depth is compile-time -> unrolled
        vp = vp_ref[d]                                          # (PAD, 10) f32
        gn1_g = vp[:C, _COL_GN1_G:_COL_GN1_G + 1]
        gn1_b = vp[:C, _COL_GN1_B:_COL_GN1_B + 1]
        b1 = vp[:2 * H, _COL_B1:_COL_B1 + 1]
        dw0 = vp[:H, _COL_DW0:_COL_DW0 + 1]
        dw1 = vp[:H, _COL_DW1:_COL_DW1 + 1]
        dw2 = vp[:H, _COL_DW2:_COL_DW2 + 1]
        dwb = vp[:H, _COL_DWB:_COL_DWB + 1]
        gn2_g = vp[:H, _COL_GN2_G:_COL_GN2_G + 1]
        gn2_b = vp[:H, _COL_GN2_B:_COL_GN2_B + 1]
        b2 = vp[:C, _COL_B2:_COL_B2 + 1]
        w1 = w1_ref[d]                        # (3, 2H, C) bf16, per-tap slabs
        w2 = w2_ref[d]                        # (C, H)     bf16

        # GroupNorm(1, C)
        xn = group_norm(x, gn1_g, gn1_b, C)                     # (C, T)

        # Conv1d(C -> 2H, k=3, pad=1): three accumulating MXU matmuls (no concat).
        conv1 = (wmm(w1[0], shift_r(xn))
                 + wmm(w1[1], xn)
                 + wmm(w1[2], shift_l(xn))
                 + b1)                                          # (2H, T)

        # GLU over the channel axis.
        g = conv1[:H] * jax.nn.sigmoid(conv1[H:])               # (H, T)

        # Depthwise Conv1d(H, k=3, pad=1, groups=H) -- pure VPU + XLU rolls.
        dw = dw0 * shift_r(g) + dw1 * g + dw2 * shift_l(g) + dwb

        # GroupNorm(1, H) + Swish.
        s = group_norm(dw, gn2_g, gn2_b, H)
        s = s * jax.nn.sigmoid(s)

        # Pointwise Conv1d(H -> C).
        res = wmm(w2, s) + b2                                   # (C, T)

        # FrequencyAttention: mean over T (lane reduce), FC bottleneck, sigmoid gate.
        ym = jnp.sum(res, axis=1, keepdims=True) * (1.0 / float(T))        # (C, 1)
        h = jnp.maximum(jnp.dot(fc1_w, ym, preferred_element_type=jnp.float32)
                        + fc1_b, 0.0)                                       # (R, 1)
        att = jax.nn.sigmoid(jnp.dot(fc2_w, h, preferred_element_type=jnp.float32)
                             + fc2_b)                                       # (C, 1)
        res = res * att

        # Residual.
        x = x + res

    out_ref[...] = x


def pallas_conv_module(x, params):
    """Run the full ConvolutionModule forward in one fused Pallas kernel."""
    B, C, T = x.shape
    layers = params["layers"]
    attn = params["attn"]
    depth = len(layers)
    H = layers[0]["conv1_w"].shape[0] // 2
    R = attn["fc1_w"].shape[0]
    PAD = max(C, 2 * H)

    def col(v):
        v = jnp.asarray(v, jnp.float32).reshape(-1)
        return jnp.pad(v, (0, PAD - v.shape[0]))

    # Pack all tiny per-layer params into a few depth-stacked arrays.
    w1_stack, w2_stack, vcols = [], [], []
    for p in layers:
        w1 = p["conv1_w"]                                       # (2H, C, 3)
        w1_stack.append(jnp.stack([w1[:, :, 0], w1[:, :, 1], w1[:, :, 2]], axis=0))
        w2_stack.append(p["conv2_w"][:, :, 0])                  # (C, H)
        dw = p["dw_w"][:, 0, :]                                 # (H, 3)
        vcols.append(jnp.stack([
            col(p["gn1_g"]), col(p["gn1_b"]), col(p["conv1_b"]),
            col(dw[:, 0]), col(dw[:, 1]), col(dw[:, 2]), col(p["dw_b"]),
            col(p["gn2_g"]), col(p["gn2_b"]), col(p["conv2_b"]),
        ], axis=1))                                             # (PAD, 10)
    w1_stack = jnp.stack(w1_stack).astype(jnp.bfloat16)         # (depth, 3, 2H, C)
    w2_stack = jnp.stack(w2_stack).astype(jnp.bfloat16)         # (depth, C, H)
    vparams = jnp.stack(vcols)                                  # (depth, PAD, 10) f32
    fc1_pack = jnp.concatenate([attn["fc1_w"], attn["fc1_b"].reshape(R, 1)], axis=1)
    fc2_pack = jnp.concatenate([attn["fc2_w"], attn["fc2_b"].reshape(C, 1)], axis=1)

    def bcast_spec(shape):
        nd = len(shape)
        return pl.BlockSpec(shape, lambda b: (0,) * nd)

    kernel = functools.partial(conv_module_kernel,
                               depth=depth, C=C, H=H, R=R, T=T)
    out = pl.pallas_call(
        kernel,
        out_shape=jax.ShapeDtypeStruct((B, C, T), jnp.float32),
        grid=(B,),
        in_specs=[
            pl.BlockSpec((None, C, T), lambda b: (b, 0, 0)),    # one batch per step
            bcast_spec(w1_stack.shape),
            bcast_spec(w2_stack.shape),
            bcast_spec(vparams.shape),
            bcast_spec(fc1_pack.shape),
            bcast_spec(fc2_pack.shape),
        ],
        out_specs=pl.BlockSpec((None, C, T), lambda b: (b, 0, 0)),
        compiler_params=pltpu.CompilerParams(
            dimension_semantics=("parallel",),
            vmem_limit_bytes=32 * 1024 * 1024),
    )(x.astype(jnp.float32), w1_stack, w2_stack, vparams, fc1_pack, fc2_pack)

    return out.astype(x.dtype)


# ---------------------------------------------------------------------------
# Pure-JAX reference (independent formulation using lax.conv) for verification
# ---------------------------------------------------------------------------
def reference_layer(x, p, attn):
    mean = jnp.mean(x, axis=(1, 2), keepdims=True)
    var = jnp.mean((x - mean) ** 2, axis=(1, 2), keepdims=True)
    xn = (x - mean) / jnp.sqrt(var + EPS)
    xn = xn * p["gn1_g"][None, :, None] + p["gn1_b"][None, :, None]

    y = jax.lax.conv_general_dilated(
        xn, p["conv1_w"], (1,), [(1, 1)], dimension_numbers=("NCH", "OIH", "NCH"))
    y = y + p["conv1_b"][None, :, None]
    H = y.shape[1] // 2
    g = y[:, :H] * jax.nn.sigmoid(y[:, H:])

    dw = jax.lax.conv_general_dilated(
        g, p["dw_w"], (1,), [(1, 1)], dimension_numbers=("NCH", "OIH", "NCH"),
        feature_group_count=H)
    dw = dw + p["dw_b"][None, :, None]

    m2 = jnp.mean(dw, axis=(1, 2), keepdims=True)
    v2 = jnp.mean((dw - m2) ** 2, axis=(1, 2), keepdims=True)
    dwn = (dw - m2) / jnp.sqrt(v2 + EPS)
    dwn = dwn * p["gn2_g"][None, :, None] + p["gn2_b"][None, :, None]
    s = dwn * jax.nn.sigmoid(dwn)

    res = jnp.einsum("oh,bht->bot", p["conv2_w"][:, :, 0], s) + p["conv2_b"][None, :, None]

    ym = jnp.mean(res, axis=2)                                  # (B, C)
    h = jax.nn.relu(ym @ attn["fc1_w"].T + attn["fc1_b"])
    att = jax.nn.sigmoid(h @ attn["fc2_w"].T + attn["fc2_b"])
    res = res * att[:, :, None]
    return x + res


def reference_module(x, params):
    for layer_p in params["layers"]:
        x = reference_layer(x, layer_p, params["attn"])
    return x


# ---------------------------------------------------------------------------
# Deterministic parameter construction (mirrors the PyTorch module's __init__)
# ---------------------------------------------------------------------------
def make_params(key, channels=32, depth=2, compress=4, kernel=3, reduction=8):
    H = channels // compress
    R = channels // reduction
    keys = jax.random.split(key, depth * 6 + 4)
    ki = iter(keys)

    def nrm(k, shape, fan_in):
        return jax.random.normal(k, shape, jnp.float32) / jnp.sqrt(float(fan_in))

    layers = []
    for _ in range(depth):
        layers.append(dict(
            gn1_g=jnp.ones((channels,), jnp.float32),
            gn1_b=jnp.zeros((channels,), jnp.float32),
            conv1_w=nrm(next(ki), (2 * H, channels, kernel), channels * kernel),
            conv1_b=nrm(next(ki), (2 * H,), channels * kernel),
            dw_w=nrm(next(ki), (H, 1, kernel), kernel),
            dw_b=nrm(next(ki), (H,), kernel),
            gn2_g=jnp.ones((H,), jnp.float32),
            gn2_b=jnp.zeros((H,), jnp.float32),
            conv2_w=nrm(next(ki), (channels, H, 1), H),
            conv2_b=nrm(next(ki), (channels,), H),
        ))
    attn = dict(
        fc1_w=nrm(next(ki), (R, channels), channels),
        fc1_b=nrm(next(ki), (R,), channels),
        fc2_w=nrm(next(ki), (channels, R), R),
        fc2_b=nrm(next(ki), (channels,), R),
    )
    return dict(layers=layers, attn=attn)


if __name__ == "__main__":
    # channels=32 -> hidden=8, attention bottleneck=4.  T=128 keeps the lane
    # (last) dimension 128-dense per the performance review.
    B, C, T = 2, 32, 128
    key = jax.random.PRNGKey(0)
    kx, kp = jax.random.split(key)
    x = jax.random.normal(kx, (B, C, T), jnp.float32)
    params = make_params(kp, channels=C, depth=2, compress=4, kernel=3, reduction=8)

    out = jax.block_until_ready(pallas_conv_module(x, params))
    ref = jax.block_until_ready(reference_module(x, params))

    assert out.shape == (B, C, T)
    assert bool(jnp.all(jnp.isfinite(out)))
    # Tolerance sized for bf16 MXU operands with f32 accumulation (~1e-3 error).
    assert jnp.allclose(out, ref, atol=2e-2, rtol=2e-2), \
        f"max abs diff {jnp.max(jnp.abs(out - ref))}"

    print("KERNEL_OK")
</pallas_src>

<mosaic_0001>
module attributes {stable_mosaic.version = 11 : i64} {
  func.func @conv_module_kernel(%arg0: i32, %arg1: memref<1x32x128xf32, #tpu.memory_space<vmem>>, %arg2: memref<2x3x16x32xbf16, #tpu.memory_space<vmem>>, %arg3: memref<2x32x8xbf16, #tpu.memory_space<vmem>>, %arg4: memref<2x32x10xf32, #tpu.memory_space<vmem>>, %arg5: memref<4x33xf32, #tpu.memory_space<vmem>>, %arg6: memref<32x5xf32, #tpu.memory_space<vmem>>, %arg7: memref<1x32x128xf32, #tpu.memory_space<vmem>>) attributes {dimension_semantics = [#tpu.dimension_semantics<parallel>], iteration_bounds = array<i64: 2>, scalar_prefetch = 0 : i64, scratch_operands = 0 : i64, tpu.core_type = #tpu.core_type<tc>, window_params = [{transform_indices = @transform_0, window_bounds = array<i64: 1, 32, 128>}, {pipeline_mode = #tpu.pipeline_mode<synchronous>, transform_indices = @transform_1, window_bounds = array<i64: 2, 3, 16, 32>}, {pipeline_mode = #tpu.pipeline_mode<synchronous>, transform_indices = @transform_2, window_bounds = array<i64: 2, 32, 8>}, {pipeline_mode = #tpu.pipeline_mode<synchronous>, transform_indices = @transform_3, window_bounds = array<i64: 2, 32, 10>}, {pipeline_mode = #tpu.pipeline_mode<synchronous>, transform_indices = @transform_4, window_bounds = array<i64: 4, 33>}, {pipeline_mode = #tpu.pipeline_mode<synchronous>, transform_indices = @transform_5, window_bounds = array<i64: 32, 5>}, {transform_indices = @transform_6, window_bounds = array<i64: 1, 32, 128>}]} {
    %c0 = arith.constant 0 : index
    %c0_0 = arith.constant 0 : index
    %c0_1 = arith.constant 0 : index
    %0 = vector.load %arg1[%c0, %c0_0, %c0_1] : memref<1x32x128xf32, #tpu.memory_space<vmem>>, vector<1x32x128xf32>
    %1 = vector.shape_cast %0 : vector<1x32x128xf32> to vector<32x128xf32>
    %2 = tpu.iota {dimensions = array<i32: 1>} : vector<1x128xi32>
    %c0_i32 = arith.constant 0 : i32
    %3 = vector.broadcast %c0_i32 : i32 to vector<1x128xi32>
    %4 = arith.cmpi ne, %2, %3 : vector<1x128xi32>
    %5 = arith.extui %4 : vector<1x128xi1> to vector<1x128xi32>
    %6 = arith.sitofp %5 : vector<1x128xi32> to vector<1x128xf32>
    %c127_i32 = arith.constant 127 : i32
    %7 = vector.broadcast %c127_i32 : i32 to vector<1x128xi32>
    %8 = arith.cmpi ne, %2, %7 : vector<1x128xi32>
    %9 = arith.extui %8 : vector<1x128xi1> to vector<1x128xi32>
    %10 = arith.sitofp %9 : vector<1x128xi32> to vector<1x128xf32>
    %c0_2 = arith.constant 0 : index
    %c0_3 = arith.constant 0 : index
    %11 = vector.load %arg5[%c0_2, %c0_3] : memref<4x33xf32, #tpu.memory_space<vmem>>, vector<4x33xf32>
    %c0_4 = arith.constant 0 : index
    %c0_5 = arith.constant 0 : index
    %12 = vector.load %arg6[%c0_4, %c0_5] : memref<32x5xf32, #tpu.memory_space<vmem>>, vector<32x5xf32>
    %13 = vector.extract_strided_slice %11 {offsets = [0, 0], sizes = [4, 32], strides = [1, 1]} : vector<4x33xf32> to vector<4x32xf32>
    %14 = vector.extract_strided_slice %11 {offsets = [0, 32], sizes = [4, 1], strides = [1, 1]} : vector<4x33xf32> to vector<4x1xf32>
    %15 = vector.extract_strided_slice %12 {offsets = [0, 0], sizes = [32, 4], strides = [1, 1]} : vector<32x5xf32> to vector<32x4xf32>
    %16 = vector.extract_strided_slice %12 {offsets = [0, 4], sizes = [32, 1], strides = [1, 1]} : vector<32x5xf32> to vector<32x1xf32>
    %c0_6 = arith.constant 0 : index
    %c0_7 = arith.constant 0 : index
    %c0_8 = arith.constant 0 : index
    %17 = vector.load %arg4[%c0_6, %c0_7, %c0_8] : memref<2x32x10xf32, #tpu.memory_space<vmem>>, vector<1x32x10xf32>
    %18 = vector.shape_cast %17 : vector<1x32x10xf32> to vector<32x10xf32>
    %19 = vector.extract_strided_slice %18 {offsets = [0, 0], sizes = [32, 1], strides = [1, 1]} : vector<32x10xf32> to vector<32x1xf32>
    %20 = vector.extract_strided_slice %18 {offsets = [0, 1], sizes = [32, 1], strides = [1, 1]} : vector<32x10xf32> to vector<32x1xf32>
    %21 = vector.extract_strided_slice %18 {offsets = [0, 2], sizes = [16, 1], strides = [1, 1]} : vector<32x10xf32> to vector<16x1xf32>
    %22 = vector.extract_strided_slice %18 {offsets = [0, 3], sizes = [8, 1], strides = [1, 1]} : vector<32x10xf32> to vector<8x1xf32>
    %23 = vector.extract_strided_slice %18 {offsets = [0, 4], sizes = [8, 1], strides = [1, 1]} : vector<32x10xf32> to vector<8x1xf32>
    %24 = vector.extract_strided_slice %18 {offsets = [0, 5], sizes = [8, 1], strides = [1, 1]} : vector<32x10xf32> to vector<8x1xf32>
    %25 = vector.extract_strided_slice %18 {offsets = [0, 6], sizes = [8, 1], strides = [1, 1]} : vector<32x10xf32> to vector<8x1xf32>
    %26 = vector.extract_strided_slice %18 {offsets = [0, 7], sizes = [8, 1], strides = [1, 1]} : vector<32x10xf32> to vector<8x1xf32>
    %27 = vector.extract_strided_slice %18 {offsets = [0, 8], sizes = [8, 1], strides = [1, 1]} : vector<32x10xf32> to vector<8x1xf32>
    %28 = vector.extract_strided_slice %18 {offsets = [0, 9], sizes = [32, 1], strides = [1, 1]} : vector<32x10xf32> to vector<32x1xf32>
    %c0_9 = arith.constant 0 : index
    %c0_10 = arith.constant 0 : index
    %c0_11 = arith.constant 0 : index
    %c0_12 = arith.constant 0 : index
    %29 = vector.load %arg2[%c0_9, %c0_10, %c0_11, %c0_12] : memref<2x3x16x32xbf16, #tpu.memory_space<vmem>>, vector<1x3x16x32xbf16>
    %30 = vector.shape_cast %29 : vector<1x3x16x32xbf16> to vector<3x16x32xbf16>
    %c0_13 = arith.constant 0 : index
    %c0_14 = arith.constant 0 : index
    %c0_15 = arith.constant 0 : index
    %31 = vector.load %arg3[%c0_13, %c0_14, %c0_15] : memref<2x32x8xbf16, #tpu.memory_space<vmem>>, vector<1x32x8xbf16>
    %32 = vector.shape_cast %31 : vector<1x32x8xbf16> to vector<32x8xbf16>
    %cst = arith.constant dense<0.000000e+00> : vector<32xf32>
    %33 = vector.multi_reduction <add>, %1, %cst [1] : vector<32x128xf32> to vector<32xf32>
    %34 = vector.shape_cast %33 : vector<32xf32> to vector<32x1xf32>
    %cst_16 = arith.constant dense<0.000000e+00> : vector<1xf32>
    %35 = vector.multi_reduction <add>, %34, %cst_16 [0] : vector<32x1xf32> to vector<1xf32>
    %36 = vector.shape_cast %35 : vector<1xf32> to vector<1x1xf32>
    %cst_17 = arith.constant 2.44140625E-4 : f32
    %37 = vector.broadcast %cst_17 : f32 to vector<1x1xf32>
    %38 = arith.mulf %36, %37 : vector<1x1xf32>
    %39 = vector.broadcast %38 : vector<1x1xf32> to vector<32x128xf32>
    %40 = arith.subf %1, %39 : vector<32x128xf32>
    %41 = arith.mulf %40, %40 : vector<32x128xf32>
    %cst_18 = arith.constant dense<0.000000e+00> : vector<32xf32>
    %42 = vector.multi_reduction <add>, %41, %cst_18 [1] : vector<32x128xf32> to vector<32xf32>
    %43 = vector.shape_cast %42 : vector<32xf32> to vector<32x1xf32>
    %cst_19 = arith.constant dense<0.000000e+00> : vector<1xf32>
    %44 = vector.multi_reduction <add>, %43, %cst_19 [0] : vector<32x1xf32> to vector<1xf32>
    %45 = vector.shape_cast %44 : vector<1xf32> to vector<1x1xf32>
    %cst_20 = arith.constant 2.44140625E-4 : f32
    %46 = vector.broadcast %cst_20 : f32 to vector<1x1xf32>
    %47 = arith.mulf %45, %46 : vector<1x1xf32>
    %cst_21 = arith.constant 9.99999974E-6 : f32
    %48 = vector.broadcast %cst_21 : f32 to vector<1x1xf32>
    %49 = arith.addf %47, %48 : vector<1x1xf32>
    %50 = math.rsqrt %49 : vector<1x1xf32>
    %51 = vector.broadcast %50 : vector<1x1xf32> to vector<32x1xf32>
    %52 = arith.mulf %51, %19 : vector<32x1xf32>
    %53 = vector.broadcast %52 : vector<32x1xf32> to vector<32x128xf32>
    %54 = arith.mulf %40, %53 : vector<32x128xf32>
    %55 = vector.broadcast %20 : vector<32x1xf32> to vector<32x128xf32>
    %56 = arith.addf %54, %55 : vector<32x128xf32>
    %57 = vector.extract_strided_slice %30 {offsets = [0, 0, 0], sizes = [1, 16, 32], strides = [1, 1, 1]} : vector<3x16x32xbf16> to vector<1x16x32xbf16>
    %58 = vector.shape_cast %57 : vector<1x16x32xbf16> to vector<16x32xbf16>
    %c1_i32 = arith.constant 1 : i32
    %59 = tpu.dynamic_rotate %56 by %c1_i32 dim 1 : vector<32x128xf32>, i32 -> vector<32x128xf32>
    %60 = vector.broadcast %6 : vector<1x128xf32> to vector<32x128xf32>
    %61 = arith.mulf %59, %60 : vector<32x128xf32>
    %62 = arith.truncf %61 : vector<32x128xf32> to vector<32x128xbf16>
    %cst_22 = arith.constant dense<0.000000e+00> : vector<16x128xf32>
    %63 = tpu.matmul %58, %62, %cst_22 {dimension_numbers = #tpu.dot_dimension_numbers<[1], [0], [0], [1], [0, 0, 1, 1], [], []>} : vector<16x32xbf16>, vector<32x128xbf16>, vector<16x128xf32> -> vector<16x128xf32>
    %64 = vector.extract_strided_slice %30 {offsets = [1, 0, 0], sizes = [1, 16, 32], strides = [1, 1, 1]} : vector<3x16x32xbf16> to vector<1x16x32xbf16>
    %65 = vector.shape_cast %64 : vector<1x16x32xbf16> to vector<16x32xbf16>
    %66 = arith.truncf %56 : vector<32x128xf32> to vector<32x128xbf16>
    %cst_23 = arith.constant dense<0.000000e+00> : vector<16x128xf32>
    %67 = tpu.matmul %65, %66, %cst_23 {dimension_numbers = #tpu.dot_dimension_numbers<[1], [0], [0], [1], [0, 0, 1, 1], [], []>} : vector<16x32xbf16>, vector<32x128xbf16>, vector<16x128xf32> -> vector<16x128xf32>
    %68 = arith.addf %63, %67 : vector<16x128xf32>
    %69 = vector.extract_strided_slice %30 {offsets = [2, 0, 0], sizes = [1, 16, 32], strides = [1, 1, 1]} : vector<3x16x32xbf16> to vector<1x16x32xbf16>
    %70 = vector.shape_cast %69 : vector<1x16x32xbf16> to vector<16x32xbf16>
    %c127_i32_24 = arith.constant 127 : i32
    %71 = tpu.dynamic_rotate %56 by %c127_i32_24 dim 1 : vector<32x128xf32>, i32 -> vector<32x128xf32>
    %72 = vector.broadcast %10 : vector<1x128xf32> to vector<32x128xf32>
    %73 = arith.mulf %71, %72 : vector<32x128xf32>
    %74 = arith.truncf %73 : vector<32x128xf32> to vector<32x128xbf16>
    %cst_25 = arith.constant dense<0.000000e+00> : vector<16x128xf32>
    %75 = tpu.matmul %70, %74, %cst_25 {dimension_numbers = #tpu.dot_dimension_numbers<[1], [0], [0], [1], [0, 0, 1, 1], [], []>} : vector<16x32xbf16>, vector<32x128xbf16>, vector<16x128xf32> -> vector<16x128xf32>
    %76 = arith.addf %68, %75 : vector<16x128xf32>
    %77 = vector.broadcast %21 : vector<16x1xf32> to vector<16x128xf32>
    %78 = arith.addf %76, %77 : vector<16x128xf32>
    %79 = vector.extract_strided_slice %78 {offsets = [0, 0], sizes = [8, 128], strides = [1, 1]} : vector<16x128xf32> to vector<8x128xf32>
    %80 = vector.extract_strided_slice %78 {offsets = [8, 0], sizes = [8, 128], strides = [1, 1]} : vector<16x128xf32> to vector<8x128xf32>
    %81 = arith.negf %80 : vector<8x128xf32>
    %82 = math.exp %81 : vector<8x128xf32>
    %cst_26 = arith.constant 1.000000e+00 : f32
    %83 = vector.broadcast %cst_26 : f32 to vector<8x128xf32>
    %84 = arith.addf %83, %82 : vector<8x128xf32>
    %85 = arith.divf %83, %84 : vector<8x128xf32>
    %86 = arith.mulf %79, %85 : vector<8x128xf32>
    %c1_i32_27 = arith.constant 1 : i32
    %87 = tpu.dynamic_rotate %86 by %c1_i32_27 dim 1 : vector<8x128xf32>, i32 -> vector<8x128xf32>
    %88 = vector.broadcast %6 : vector<1x128xf32> to vector<8x128xf32>
    %89 = arith.mulf %87, %88 : vector<8x128xf32>
    %90 = vector.broadcast %22 : vector<8x1xf32> to vector<8x128xf32>
    %91 = arith.mulf %90, %89 : vector<8x128xf32>
    %92 = vector.broadcast %23 : vector<8x1xf32> to vector<8x128xf32>
    %93 = arith.mulf %92, %86 : vector<8x128xf32>
    %94 = arith.addf %91, %93 : vector<8x128xf32>
    %c127_i32_28 = arith.constant 127 : i32
    %95 = tpu.dynamic_rotate %86 by %c127_i32_28 dim 1 : vector<8x128xf32>, i32 -> vector<8x128xf32>
    %96 = vector.broadcast %10 : vector<1x128xf32> to vector<8x128xf32>
    %97 = arith.mulf %95, %96 : vector<8x128xf32>
    %98 = vector.broadcast %24 : vector<8x1xf32> to vector<8x128xf32>
    %99 = arith.mulf %98, %97 : vector<8x128xf32>
    %100 = arith.addf %94, %99 : vector<8x128xf32>
    %101 = vector.broadcast %25 : vector<8x1xf32> to vector<8x128xf32>
    %102 = arith.addf %100, %101 : vector<8x128xf32>
    %cst_29 = arith.constant dense<0.000000e+00> : vector<8xf32>
    %103 = vector.multi_reduction <add>, %102, %cst_29 [1] : vector<8x128xf32> to vector<8xf32>
    %104 = vector.shape_cast %103 : vector<8xf32> to vector<8x1xf32>
    %cst_30 = arith.constant dense<0.000000e+00> : vector<1xf32>
    %105 = vector.multi_reduction <add>, %104, %cst_30 [0] : vector<8x1xf32> to vector<1xf32>
    %106 = vector.shape_cast %105 : vector<1xf32> to vector<1x1xf32>
    %cst_31 = arith.constant 9.765625E-4 : f32
    %107 = vector.broadcast %cst_31 : f32 to vector<1x1xf32>
    %108 = arith.mulf %106, %107 : vector<1x1xf32>
    %109 = vector.broadcast %108 : vector<1x1xf32> to vector<8x128xf32>
    %110 = arith.subf %102, %109 : vector<8x128xf32>
    %111 = arith.mulf %110, %110 : vector<8x128xf32>
    %cst_32 = arith.constant dense<0.000000e+00> : vector<8xf32>
    %112 = vector.multi_reduction <add>, %111, %cst_32 [1] : vector<8x128xf32> to vector<8xf32>
    %113 = vector.shape_cast %112 : vector<8xf32> to vector<8x1xf32>
    %cst_33 = arith.constant dense<0.000000e+00> : vector<1xf32>
    %114 = vector.multi_reduction <add>, %113, %cst_33 [0] : vector<8x1xf32> to vector<1xf32>
    %115 = vector.shape_cast %114 : vector<1xf32> to vector<1x1xf32>
    %cst_34 = arith.constant 9.765625E-4 : f32
    %116 = vector.broadcast %cst_34 : f32 to vector<1x1xf32>
    %117 = arith.mulf %115, %116 : vector<1x1xf32>
    %cst_35 = arith.constant 9.99999974E-6 : f32
    %118 = vector.broadcast %cst_35 : f32 to vector<1x1xf32>
    %119 = arith.addf %117, %118 : vector<1x1xf32>
    %120 = math.rsqrt %119 : vector<1x1xf32>
    %121 = vector.broadcast %120 : vector<1x1xf32> to vector<8x1xf32>
    %122 = arith.mulf %121, %26 : vector<8x1xf32>
    %123 = vector.broadcast %122 : vector<8x1xf32> to vector<8x128xf32>
    %124 = arith.mulf %110, %123 : vector<8x128xf32>
    %125 = vector.broadcast %27 : vector<8x1xf32> to vector<8x128xf32>
    %126 = arith.addf %124, %125 : vector<8x128xf32>
    %127 = arith.negf %126 : vector<8x128xf32>
    %128 = math.exp %127 : vector<8x128xf32>
    %cst_36 = arith.constant 1.000000e+00 : f32
    %129 = vector.broadcast %cst_36 : f32 to vector<8x128xf32>
    %130 = arith.addf %129, %128 : vector<8x128xf32>
    %131 = arith.divf %129, %130 : vector<8x128xf32>
    %132 = arith.mulf %126, %131 : vector<8x128xf32>
    %133 = arith.truncf %132 : vector<8x128xf32> to vector<8x128xbf16>
    %cst_37 = arith.constant dense<0.000000e+00> : vector<32x128xf32>
    %134 = tpu.matmul %32, %133, %cst_37 {dimension_numbers = #tpu.dot_dimension_numbers<[1], [0], [0], [1], [0, 0, 1, 1], [], []>} : vector<32x8xbf16>, vector<8x128xbf16>, vector<32x128xf32> -> vector<32x128xf32>
    %135 = vector.broadcast %28 : vector<32x1xf32> to vector<32x128xf32>
    %136 = arith.addf %134, %135 : vector<32x128xf32>
    %cst_38 = arith.constant dense<0.000000e+00> : vector<32xf32>
    %137 = vector.multi_reduction <add>, %136, %cst_38 [1] : vector<32x128xf32> to vector<32xf32>
    %138 = vector.shape_cast %137 : vector<32xf32> to vector<32x1xf32>
    %cst_39 = arith.constant 7.812500e-03 : f32
    %139 = vector.broadcast %cst_39 : f32 to vector<32x1xf32>
    %140 = arith.mulf %138, %139 : vector<32x1xf32>
    %cst_40 = arith.constant dense<0.000000e+00> : vector<4x1xf32>
    %141 = tpu.matmul %13, %140, %cst_40 {dimension_numbers = #tpu.dot_dimension_numbers<[1], [0], [0], [1], [0, 0, 1, 1], [], []>} : vector<4x32xf32>, vector<32x1xf32>, vector<4x1xf32> -> vector<4x1xf32>
    %142 = arith.addf %141, %14 : vector<4x1xf32>
    %cst_41 = arith.constant 0.000000e+00 : f32
    %143 = vector.broadcast %cst_41 : f32 to vector<4x1xf32>
    %144 = arith.maximumf %142, %143 : vector<4x1xf32>
    %cst_42 = arith.constant dense<0.000000e+00> : vector<32x1xf32>
    %145 = tpu.matmul %15, %144, %cst_42 {dimension_numbers = #tpu.dot_dimension_numbers<[1], [0], [0], [1], [0, 0, 1, 1], [], []>} : vector<32x4xf32>, vector<4x1xf32>, vector<32x1xf32> -> vector<32x1xf32>
    %146 = arith.addf %145, %16 : vector<32x1xf32>
    %147 = arith.negf %146 : vector<32x1xf32>
    %148 = math.exp %147 : vector<32x1xf32>
    %cst_43 = arith.constant 1.000000e+00 : f32
    %149 = vector.broadcast %cst_43 : f32 to vector<32x1xf32>
    %150 = arith.addf %149, %148 : vector<32x1xf32>
    %151 = arith.divf %149, %150 : vector<32x1xf32>
    %152 = vector.broadcast %151 : vector<32x1xf32> to vector<32x128xf32>
    %153 = arith.mulf %136, %152 : vector<32x128xf32>
    %154 = arith.addf %1, %153 : vector<32x128xf32>
    %c1 = arith.constant 1 : index
    %c0_44 = arith.constant 0 : index
    %c0_45 = arith.constant 0 : index
    %155 = vector.load %arg4[%c1, %c0_44, %c0_45] : memref<2x32x10xf32, #tpu.memory_space<vmem>>, vector<1x32x10xf32>
    %156 = vector.shape_cast %155 : vector<1x32x10xf32> to vector<32x10xf32>
    %157 = vector.extract_strided_slice %156 {offsets = [0, 0], sizes = [32, 1], strides = [1, 1]} : vector<32x10xf32> to vector<32x1xf32>
    %158 = vector.extract_strided_slice %156 {offsets = [0, 1], sizes = [32, 1], strides = [1, 1]} : vector<32x10xf32> to vector<32x1xf32>
    %159 = vector.extract_strided_slice %156 {offsets = [0, 2], sizes = [16, 1], strides = [1, 1]} : vector<32x10xf32> to vector<16x1xf32>
    %160 = vector.extract_strided_slice %156 {offsets = [0, 3], sizes = [8, 1], strides = [1, 1]} : vector<32x10xf32> to vector<8x1xf32>
    %161 = vector.extract_strided_slice %156 {offsets = [0, 4], sizes = [8, 1], strides = [1, 1]} : vector<32x10xf32> to vector<8x1xf32>
    %162 = vector.extract_strided_slice %156 {offsets = [0, 5], sizes = [8, 1], strides = [1, 1]} : vector<32x10xf32> to vector<8x1xf32>
    %163 = vector.extract_strided_slice %156 {offsets = [0, 6], sizes = [8, 1], strides = [1, 1]} : vector<32x10xf32> to vector<8x1xf32>
    %164 = vector.extract_strided_slice %156 {offsets = [0, 7], sizes = [8, 1], strides = [1, 1]} : vector<32x10xf32> to vector<8x1xf32>
    %165 = vector.extract_strided_slice %156 {offsets = [0, 8], sizes = [8, 1], strides = [1, 1]} : vector<32x10xf32> to vector<8x1xf32>
    %166 = vector.extract_strided_slice %156 {offsets = [0, 9], sizes = [32, 1], strides = [1, 1]} : vector<32x10xf32> to vector<32x1xf32>
    %c1_46 = arith.constant 1 : index
    %c0_47 = arith.constant 0 : index
    %c0_48 = arith.constant 0 : index
    %c0_49 = arith.constant 0 : index
    %167 = vector.load %arg2[%c1_46, %c0_47, %c0_48, %c0_49] : memref<2x3x16x32xbf16, #tpu.memory_space<vmem>>, vector<1x3x16x32xbf16>
    %168 = vector.shape_cast %167 : vector<1x3x16x32xbf16> to vector<3x16x32xbf16>
    %c1_50 = arith.constant 1 : index
    %c0_51 = arith.constant 0 : index
    %c0_52 = arith.constant 0 : index
    %169 = vector.load %arg3[%c1_50, %c0_51, %c0_52] : memref<2x32x8xbf16, #tpu.memory_space<vmem>>, vector<1x32x8xbf16>
    %170 = vector.shape_cast %169 : vector<1x32x8xbf16> to vector<32x8xbf16>
    %cst_53 = arith.constant dense<0.000000e+00> : vector<32xf32>
    %171 = vector.multi_reduction <add>, %154, %cst_53 [1] : vector<32x128xf32> to vector<32xf32>
    %172 = vector.shape_cast %171 : vector<32xf32> to vector<32x1xf32>
    %cst_54 = arith.constant dense<0.000000e+00> : vector<1xf32>
    %173 = vector.multi_reduction <add>, %172, %cst_54 [0] : vector<32x1xf32> to vector<1xf32>
    %174 = vector.shape_cast %173 : vector<1xf32> to vector<1x1xf32>
    %cst_55 = arith.constant 2.44140625E-4 : f32
    %175 = vector.broadcast %cst_55 : f32 to vector<1x1xf32>
    %176 = arith.mulf %174, %175 : vector<1x1xf32>
    %177 = vector.broadcast %176 : vector<1x1xf32> to vector<32x128xf32>
    %178 = arith.subf %154, %177 : vector<32x128xf32>
    %179 = arith.mulf %178, %178 : vector<32x128xf32>
    %cst_56 = arith.constant dense<0.000000e+00> : vector<32xf32>
    %180 = vector.multi_reduction <add>, %179, %cst_56 [1] : vector<32x128xf32> to vector<32xf32>
    %181 = vector.shape_cast %180 : vector<32xf32> to vector<32x1xf32>
    %cst_57 = arith.constant dense<0.000000e+00> : vector<1xf32>
    %182 = vector.multi_reduction <add>, %181, %cst_57 [0] : vector<32x1xf32> to vector<1xf32>
    %183 = vector.shape_cast %182 : vector<1xf32> to vector<1x1xf32>
    %cst_58 = arith.constant 2.44140625E-4 : f32
    %184 = vector.broadcast %cst_58 : f32 to vector<1x1xf32>
    %185 = arith.mulf %183, %184 : vector<1x1xf32>
    %cst_59 = arith.constant 9.99999974E-6 : f32
    %186 = vector.broadcast %cst_59 : f32 to vector<1x1xf32>
    %187 = arith.addf %185, %186 : vector<1x1xf32>
    %188 = math.rsqrt %187 : vector<1x1xf32>
    %189 = vector.broadcast %188 : vector<1x1xf32> to vector<32x1xf32>
    %190 = arith.mulf %189, %157 : vector<32x1xf32>
    %191 = vector.broadcast %190 : vector<32x1xf32> to vector<32x128xf32>
    %192 = arith.mulf %178, %191 : vector<32x128xf32>
    %193 = vector.broadcast %158 : vector<32x1xf32> to vector<32x128xf32>
    %194 = arith.addf %192, %193 : vector<32x128xf32>
    %195 = vector.extract_strided_slice %168 {offsets = [0, 0, 0], sizes = [1, 16, 32], strides = [1, 1, 1]} : vector<3x16x32xbf16> to vector<1x16x32xbf16>
    %196 = vector.shape_cast %195 : vector<1x16x32xbf16> to vector<16x32xbf16>
    %c1_i32_60 = arith.constant 1 : i32
    %197 = tpu.dynamic_rotate %194 by %c1_i32_60 dim 1 : vector<32x128xf32>, i32 -> vector<32x128xf32>
    %198 = vector.broadcast %6 : vector<1x128xf32> to vector<32x128xf32>
    %199 = arith.mulf %197, %198 : vector<32x128xf32>
    %200 = arith.truncf %199 : vector<32x128xf32> to vector<32x128xbf16>
    %cst_61 = arith.constant dense<0.000000e+00> : vector<16x128xf32>
    %201 = tpu.matmul %196, %200, %cst_61 {dimension_numbers = #tpu.dot_dimension_numbers<[1], [0], [0], [1], [0, 0, 1, 1], [], []>} : vector<16x32xbf16>, vector<32x128xbf16>, vector<16x128xf32> -> vector<16x128xf32>
    %202 = vector.extract_strided_slice %168 {offsets = [1, 0, 0], sizes = [1, 16, 32], strides = [1, 1, 1]} : vector<3x16x32xbf16> to vector<1x16x32xbf16>
    %203 = vector.shape_cast %202 : vector<1x16x32xbf16> to vector<16x32xbf16>
    %204 = arith.truncf %194 : vector<32x128xf32> to vector<32x128xbf16>
    %cst_62 = arith.constant dense<0.000000e+00> : vector<16x128xf32>
    %205 = tpu.matmul %203, %204, %cst_62 {dimension_numbers = #tpu.dot_dimension_numbers<[1], [0], [0], [1], [0, 0, 1, 1], [], []>} : vector<16x32xbf16>, vector<32x128xbf16>, vector<16x128xf32> -> vector<16x128xf32>
    %206 = arith.addf %201, %205 : vector<16x128xf32>
    %207 = vector.extract_strided_slice %168 {offsets = [2, 0, 0], sizes = [1, 16, 32], strides = [1, 1, 1]} : vector<3x16x32xbf16> to vector<1x16x32xbf16>
    %208 = vector.shape_cast %207 : vector<1x16x32xbf16> to vector<16x32xbf16>
    %c127_i32_63 = arith.constant 127 : i32
    %209 = tpu.dynamic_rotate %194 by %c127_i32_63 dim 1 : vector<32x128xf32>, i32 -> vector<32x128xf32>
    %210 = vector.broadcast %10 : vector<1x128xf32> to vector<32x128xf32>
    %211 = arith.mulf %209, %210 : vector<32x128xf32>
    %212 = arith.truncf %211 : vector<32x128xf32> to vector<32x128xbf16>
    %cst_64 = arith.constant dense<0.000000e+00> : vector<16x128xf32>
    %213 = tpu.matmul %208, %212, %cst_64 {dimension_numbers = #tpu.dot_dimension_numbers<[1], [0], [0], [1], [0, 0, 1, 1], [], []>} : vector<16x32xbf16>, vector<32x128xbf16>, vector<16x128xf32> -> vector<16x128xf32>
    %214 = arith.addf %206, %213 : vector<16x128xf32>
    %215 = vector.broadcast %159 : vector<16x1xf32> to vector<16x128xf32>
    %216 = arith.addf %214, %215 : vector<16x128xf32>
    %217 = vector.extract_strided_slice %216 {offsets = [0, 0], sizes = [8, 128], strides = [1, 1]} : vector<16x128xf32> to vector<8x128xf32>
    %218 = vector.extract_strided_slice %216 {offsets = [8, 0], sizes = [8, 128], strides = [1, 1]} : vector<16x128xf32> to vector<8x128xf32>
    %219 = arith.negf %218 : vector<8x128xf32>
    %220 = math.exp %219 : vector<8x128xf32>
    %cst_65 = arith.constant 1.000000e+00 : f32
    %221 = vector.broadcast %cst_65 : f32 to vector<8x128xf32>
    %222 = arith.addf %221, %220 : vector<8x128xf32>
    %223 = arith.divf %221, %222 : vector<8x128xf32>
    %224 = arith.mulf %217, %223 : vector<8x128xf32>
    %c1_i32_66 = arith.constant 1 : i32
    %225 = tpu.dynamic_rotate %224 by %c1_i32_66 dim 1 : vector<8x128xf32>, i32 -> vector<8x128xf32>
    %226 = vector.broadcast %6 : vector<1x128xf32> to vector<8x128xf32>
    %227 = arith.mulf %225, %226 : vector<8x128xf32>
    %228 = vector.broadcast %160 : vector<8x1xf32> to vector<8x128xf32>
    %229 = arith.mulf %228, %227 : vector<8x128xf32>
    %230 = vector.broadcast %161 : vector<8x1xf32> to vector<8x128xf32>
    %231 = arith.mulf %230, %224 : vector<8x128xf32>
    %232 = arith.addf %229, %231 : vector<8x128xf32>
    %c127_i32_67 = arith.constant 127 : i32
    %233 = tpu.dynamic_rotate %224 by %c127_i32_67 dim 1 : vector<8x128xf32>, i32 -> vector<8x128xf32>
    %234 = vector.broadcast %10 : vector<1x128xf32> to vector<8x128xf32>
    %235 = arith.mulf %233, %234 : vector<8x128xf32>
    %236 = vector.broadcast %162 : vector<8x1xf32> to vector<8x128xf32>
    %237 = arith.mulf %236, %235 : vector<8x128xf32>
    %238 = arith.addf %232, %237 : vector<8x128xf32>
    %239 = vector.broadcast %163 : vector<8x1xf32> to vector<8x128xf32>
    %240 = arith.addf %238, %239 : vector<8x128xf32>
    %cst_68 = arith.constant dense<0.000000e+00> : vector<8xf32>
    %241 = vector.multi_reduction <add>, %240, %cst_68 [1] : vector<8x128xf32> to vector<8xf32>
    %242 = vector.shape_cast %241 : vector<8xf32> to vector<8x1xf32>
    %cst_69 = arith.constant dense<0.000000e+00> : vector<1xf32>
    %243 = vector.multi_reduction <add>, %242, %cst_69 [0] : vector<8x1xf32> to vector<1xf32>
    %244 = vector.shape_cast %243 : vector<1xf32> to vector<1x1xf32>
    %cst_70 = arith.constant 9.765625E-4 : f32
    %245 = vector.broadcast %cst_70 : f32 to vector<1x1xf32>
    %246 = arith.mulf %244, %245 : vector<1x1xf32>
    %247 = vector.broadcast %246 : vector<1x1xf32> to vector<8x128xf32>
    %248 = arith.subf %240, %247 : vector<8x128xf32>
    %249 = arith.mulf %248, %248 : vector<8x128xf32>
    %cst_71 = arith.constant dense<0.000000e+00> : vector<8xf32>
    %250 = vector.multi_reduction <add>, %249, %cst_71 [1] : vector<8x128xf32> to vector<8xf32>
    %251 = vector.shape_cast %250 : vector<8xf32> to vector<8x1xf32>
    %cst_72 = arith.constant dense<0.000000e+00> : vector<1xf32>
    %252 = vector.multi_reduction <add>, %251, %cst_72 [0] : vector<8x1xf32> to vector<1xf32>
    %253 = vector.shape_cast %252 : vector<1xf32> to vector<1x1xf32>
    %cst_73 = arith.constant 9.765625E-4 : f32
    %254 = vector.broadcast %cst_73 : f32 to vector<1x1xf32>
    %255 = arith.mulf %253, %254 : vector<1x1xf32>
    %cst_74 = arith.constant 9.99999974E-6 : f32
    %256 = vector.broadcast %cst_74 : f32 to vector<1x1xf32>
    %257 = arith.addf %255, %256 : vector<1x1xf32>
    %258 = math.rsqrt %257 : vector<1x1xf32>
    %259 = vector.broadcast %258 : vector<1x1xf32> to vector<8x1xf32>
    %260 = arith.mulf %259, %164 : vector<8x1xf32>
    %261 = vector.broadcast %260 : vector<8x1xf32> to vector<8x128xf32>
    %262 = arith.mulf %248, %261 : vector<8x128xf32>
    %263 = vector.broadcast %165 : vector<8x1xf32> to vector<8x128xf32>
    %264 = arith.addf %262, %263 : vector<8x128xf32>
    %265 = arith.negf %264 : vector<8x128xf32>
    %266 = math.exp %265 : vector<8x128xf32>
    %cst_75 = arith.constant 1.000000e+00 : f32
    %267 = vector.broadcast %cst_75 : f32 to vector<8x128xf32>
    %268 = arith.addf %267, %266 : vector<8x128xf32>
    %269 = arith.divf %267, %268 : vector<8x128xf32>
    %270 = arith.mulf %264, %269 : vector<8x128xf32>
    %271 = arith.truncf %270 : vector<8x128xf32> to vector<8x128xbf16>
    %cst_76 = arith.constant dense<0.000000e+00> : vector<32x128xf32>
    %272 = tpu.matmul %170, %271, %cst_76 {dimension_numbers = #tpu.dot_dimension_numbers<[1], [0], [0], [1], [0, 0, 1, 1], [], []>} : vector<32x8xbf16>, vector<8x128xbf16>, vector<32x128xf32> -> vector<32x128xf32>
    %273 = vector.broadcast %166 : vector<32x1xf32> to vector<32x128xf32>
    %274 = arith.addf %272, %273 : vector<32x128xf32>
    %cst_77 = arith.constant dense<0.000000e+00> : vector<32xf32>
    %275 = vector.multi_reduction <add>, %274, %cst_77 [1] : vector<32x128xf32> to vector<32xf32>
    %276 = vector.shape_cast %275 : vector<32xf32> to vector<32x1xf32>
    %cst_78 = arith.constant 7.812500e-03 : f32
    %277 = vector.broadcast %cst_78 : f32 to vector<32x1xf32>
    %278 = arith.mulf %276, %277 : vector<32x1xf32>
    %cst_79 = arith.constant dense<0.000000e+00> : vector<4x1xf32>
    %279 = tpu.matmul %13, %278, %cst_79 {dimension_numbers = #tpu.dot_dimension_numbers<[1], [0], [0], [1], [0, 0, 1, 1], [], []>} : vector<4x32xf32>, vector<32x1xf32>, vector<4x1xf32> -> vector<4x1xf32>
    %280 = arith.addf %279, %14 : vector<4x1xf32>
    %cst_80 = arith.constant 0.000000e+00 : f32
    %281 = vector.broadcast %cst_80 : f32 to vector<4x1xf32>
    %282 = arith.maximumf %280, %281 : vector<4x1xf32>
    %cst_81 = arith.constant dense<0.000000e+00> : vector<32x1xf32>
    %283 = tpu.matmul %15, %282, %cst_81 {dimension_numbers = #tpu.dot_dimension_numbers<[1], [0], [0], [1], [0, 0, 1, 1], [], []>} : vector<32x4xf32>, vector<4x1xf32>, vector<32x1xf32> -> vector<32x1xf32>
    %284 = arith.addf %283, %16 : vector<32x1xf32>
    %285 = arith.negf %284 : vector<32x1xf32>
    %286 = math.exp %285 : vector<32x1xf32>
    %cst_82 = arith.constant 1.000000e+00 : f32
    %287 = vector.broadcast %cst_82 : f32 to vector<32x1xf32>
    %288 = arith.addf %287, %286 : vector<32x1xf32>
    %289 = arith.divf %287, %288 : vector<32x1xf32>
    %290 = vector.broadcast %289 : vector<32x1xf32> to vector<32x128xf32>
    %291 = arith.mulf %274, %290 : vector<32x128xf32>
    %292 = arith.addf %154, %291 : vector<32x128xf32>
    %c0_83 = arith.constant 0 : index
    %c0_84 = arith.constant 0 : index
    %c0_85 = arith.constant 0 : index
    %293 = vector.load %arg7[%c0_83, %c0_84, %c0_85] : memref<1x32x128xf32, #tpu.memory_space<vmem>>, vector<1x32x128xf32>
    %294 = vector.shape_cast %293 : vector<1x32x128xf32> to vector<32x128xf32>
    %295 = vector.shape_cast %292 : vector<32x128xf32> to vector<1x32x128xf32>
    tpu.vector_store %arg7[%c0_83, %c0_84, %c0_85], %295 {strides = array<i32>} : memref<1x32x128xf32, #tpu.memory_space<vmem>>, vector<1x32x128xf32>,
    return
  }
  func.func @transform_0(%arg0: i32) -> (i32, i32, i32) {
    %c0_i32 = arith.constant 0 : i32
    %c0_i32_0 = arith.constant 0 : i32
    %c0_i32_1 = arith.constant 0 : i32
    return %arg0, %c0_i32, %c0_i32_0 : i32, i32, i32
  }
  func.func @transform_1(%arg0: i32) -> (i32, i32, i32, i32) {
    %c0_i32 = arith.constant 0 : i32
    %c0_i32_0 = arith.constant 0 : i32
    %c0_i32_1 = arith.constant 0 : i32
    %c0_i32_2 = arith.constant 0 : i32
    %c0_i32_3 = arith.constant 0 : i32
    return %c0_i32, %c0_i32_0, %c0_i32_1, %c0_i32_2 : i32, i32, i32, i32
  }
  func.func @transform_2(%arg0: i32) -> (i32, i32, i32) {
    %c0_i32 = arith.constant 0 : i32
    %c0_i32_0 = arith.constant 0 : i32
    %c0_i32_1 = arith.constant 0 : i32
    %c0_i32_2 = arith.constant 0 : i32
    return %c0_i32, %c0_i32_0, %c0_i32_1 : i32, i32, i32
  }
  func.func @transform_3(%arg0: i32) -> (i32, i32, i32) {
    %c0_i32 = arith.constant 0 : i32
    %c0_i32_0 = arith.constant 0 : i32
    %c0_i32_1 = arith.constant 0 : i32
    %c0_i32_2 = arith.constant 0 : i32
    return %c0_i32, %c0_i32_0, %c0_i32_1 : i32, i32, i32
  }
  func.func @transform_4(%arg0: i32) -> (i32, i32) {
    %c0_i32 = arith.constant 0 : i32
    %c0_i32_0 = arith.constant 0 : i32
    %c0_i32_1 = arith.constant 0 : i32
    return %c0_i32, %c0_i32_0 : i32, i32
  }
  func.func @transform_5(%arg0: i32) -> (i32, i32) {
    %c0_i32 = arith.constant 0 : i32
    %c0_i32_0 = arith.constant 0 : i32
    %c0_i32_1 = arith.constant 0 : i32
    return %c0_i32, %c0_i32_0 : i32, i32
  }
  func.func @transform_6(%arg0: i32) -> (i32, i32, i32) {
    %c0_i32 = arith.constant 0 : i32
    %c0_i32_0 = arith.constant 0 : i32
    %c0_i32_1 = arith.constant 0 : i32
    return %arg0, %c0_i32, %c0_i32_0 : i32, i32, i32
  }
}

</mosaic_0001>

<llo_original>
// kernel: tpu_custom_call.1
$region0: #{tpu_custom_call.1}
  #allocation0 [shape = 'u32[]', space=smem, size = 0x4, offset = 0x4, fixed_abs, tag = 'smem constant byte address 0x4 - core index']
  #allocation1 [shape = 'u32[144,128]{1,0:T(1,128)}', space=vmem, size = 0x12000, scoped, tag = 'internal scratch']
  %s0 = inlined_call_operand.vmem [shape: f32[2,32,128], index: 0, kind: input, shape index: {}]
  %s1 = inlined_call_operand.vmem [shape: bf16[2,3,16,32], index: 1, kind: input, shape index: {}]
  %s2 = inlined_call_operand.vmem [shape: bf16[2,32,8], index: 2, kind: input, shape index: {}]
  %s3 = inlined_call_operand.vmem [shape: f32[2,32,10], index: 3, kind: input, shape index: {}]
  %s4 = inlined_call_operand.vmem [shape: f32[4,33], index: 4, kind: input, shape index: {}]
  %s5 = inlined_call_operand.vmem [shape: f32[32,5], index: 5, kind: input, shape index: {}]
  %s6 = inlined_call_operand.hbm [shape: f32[2,32,128], index: 6, kind: output, shape index: {}]
  %s7 = sld [smem:[#allocation0]]
  $region57: #{tpu_custom_call.1} parent=0
    _
  %s9 = ssub.s32 1, %s7
  %s10 = scalar_select 0, %s9, %s7
  $region1: #{tpu_custom_call.1} parent=0
    #allocation2 [shape = 'u8[32768]{0}', space=vmem, size = 0x8000, scoped, tag = 'output window, operand 0']
    #allocation3 [shape = 's32[2]{0}', space=sflag, size = 0x8, scoped, tag = 'scoped memory for tpu_custom_call.1']
    %11 = vsyncpa [#allocation3], 0
    %s12 = scalar_lea.sflag [#allocation3], 1
    %13 = vsyncpa %s12, 0
    loop: start=0, step=1, limit=4
    $region2: #{tpu_custom_call.1} parent=1 // loop_pre_header
      _
    $region3: #{tpu_custom_call.1} parent=1 // loop_header
      %s15 = sphi 0, %s19
      %p16 = scmp.ge.s32.totalorder %s15, 4
      %s25 = sphi 0, %s27
      %s28 = sphi 0, %s25
      %s29 = sphi 0, %s28
      %s45 = sphi 0, %s29
      %s49 = sphi 0, %s49
      %s51 = sphi 0, %s49
      %s52 = sphi 0, %s51
      %s66 = sphi 0, %s52
      %s70 = sphi 0, %s70
      %s72 = sphi 0, %s70
      %s73 = sphi 0, %s72
      %s87 = sphi 0, %s73
      %s91 = sphi 0, %s91
      %s93 = sphi 0, %s91
      %s94 = sphi 0, %s93
      %s108 = sphi 0, %s94
      %s112 = sphi 0, %s112
      %s114 = sphi 0, %s112
      %s115 = sphi 0, %s114
      %s129 = sphi 0, %s115
      %s133 = sphi 0, %s133
      %s135 = sphi 0, %s133
      %s136 = sphi 0, %s135
      %s150 = sphi 0, %s136
      %s156 = sphi 0, %s158
      %s159 = sphi 0, %s156
      %s160 = sphi 0, %s159
      %s176 = sphi 0, %s160
    $region4: #{tpu_custom_call.1} parent=1 // loop_header_branch
      %18 = sbr.rel (%p16) target = $region8
    $region5: #{tpu_custom_call.1} parent=1 // loop_body
      %s20 = ssub.s32 %s15, 1
      %s21 = ssub.s32 %s15, 2
      %s22 = sadd.s32 %s15, 1
      %s23 = ssub.s32 %s15, %s22
      %p24 = scmp.eq.s32.totalorder %s23, 0
      %s26 = sadd.s32 %s25, 1
      %s27 = scalar_select %p24, %s25, %s26
      %p30 = pneg %p24
      %p31 = scmp.eq.s32.totalorder %s15, 1
      %p32 = por %p30, %p31
      %p33 = scmp.ne.s32.totalorder %s25, %s28
      %p34 = scmp.eq.s32.totalorder %s15, 0
      %p35 = por %p33, %p34
      %p36 = scmp.ne.s32.totalorder %s25, %s28
      %p37 = scmp.eq.s32.totalorder %s20, 1
      %p38 = por %p36, %p37
      %p39 = scmp.ne.s32.totalorder %s28, %s29
      %p40 = scmp.eq.s32.totalorder %s20, 0
      %p41 = por %p39, %p40
      %p42 = scmp.ne.s32.totalorder %s28, %s29
      %p43 = scmp.eq.s32.totalorder %s21, 1
      %p44 = por %p42, %p43
      %p46 = scmp.ne.s32.totalorder %s29, %s45
      %p47 = scmp.eq.s32.totalorder %s21, 0
      %p48 = por %p46, %p47
      %s50 = sadd.s32 %s49, 1
      %p53 = scmp.eq.s32.totalorder %s15, 1
      %p54 = scmp.ne.s32.totalorder %s49, %s51
      %p55 = scmp.eq.s32.totalorder %s15, 0
      %p56 = por %p54, %p55
      %p57 = scmp.ne.s32.totalorder %s49, %s51
      %p58 = scmp.eq.s32.totalorder %s20, 1
      %p59 = por %p57, %p58
      %p60 = scmp.ne.s32.totalorder %s51, %s52
      %p61 = scmp.eq.s32.totalorder %s20, 0
      %p62 = por %p60, %p61
      %p63 = scmp.ne.s32.totalorder %s51, %s52
      %p64 = scmp.eq.s32.totalorder %s21, 1
      %p65 = por %p63, %p64
      %p67 = scmp.ne.s32.totalorder %s52, %s66
      %p68 = scmp.eq.s32.totalorder %s21, 0
      %p69 = por %p67, %p68
      %s71 = sadd.s32 %s70, 1
      %p74 = scmp.eq.s32.totalorder %s15, 1
      %p75 = scmp.ne.s32.totalorder %s70, %s72
      %p76 = scmp.eq.s32.totalorder %s15, 0
      %p77 = por %p75, %p76
      %p78 = scmp.ne.s32.totalorder %s70, %s72
      %p79 = scmp.eq.s32.totalorder %s20, 1
      %p80 = por %p78, %p79
      %p81 = scmp.ne.s32.totalorder %s72, %s73
      %p82 = scmp.eq.s32.totalorder %s20, 0
      %p83 = por %p81, %p82
      %p84 = scmp.ne.s32.totalorder %s72, %s73
      %p85 = scmp.eq.s32.totalorder %s21, 1
      %p86 = por %p84, %p85
      %p88 = scmp.ne.s32.totalorder %s73, %s87
      %p89 = scmp.eq.s32.totalorder %s21, 0
      %p90 = por %p88, %p89
      %s92 = sadd.s32 %s91, 1
      %p95 = scmp.eq.s32.totalorder %s15, 1
      %p96 = scmp.ne.s32.totalorder %s91, %s93
      %p97 = scmp.eq.s32.totalorder %s15, 0
      %p98 = por %p96, %p97
      %p99 = scmp.ne.s32.totalorder %s91, %s93
      %p100 = scmp.eq.s32.totalorder %s20, 1
      %p101 = por %p99, %p100
      %p102 = scmp.ne.s32.totalorder %s93, %s94
      %p103 = scmp.eq.s32.totalorder %s20, 0
      %p104 = por %p102, %p103
      %p105 = scmp.ne.s32.totalorder %s93, %s94
      %p106 = scmp.eq.s32.totalorder %s21, 1
      %p107 = por %p105, %p106
      %p109 = scmp.ne.s32.totalorder %s94, %s108
      %p110 = scmp.eq.s32.totalorder %s21, 0
      %p111 = por %p109, %p110
      %s113 = sadd.s32 %s112, 1
      %p116 = scmp.eq.s32.totalorder %s15, 1
      %p117 = scmp.ne.s32.totalorder %s112, %s114
      %p118 = scmp.eq.s32.totalorder %s15, 0
      %p119 = por %p117, %p118
      %p120 = scmp.ne.s32.totalorder %s112, %s114
      %p121 = scmp.eq.s32.totalorder %s20, 1
      %p122 = por %p120, %p121
      %p123 = scmp.ne.s32.totalorder %s114, %s115
      %p124 = scmp.eq.s32.totalorder %s20, 0
      %p125 = por %p123, %p124
      %p126 = scmp.ne.s32.totalorder %s114, %s115
      %p127 = scmp.eq.s32.totalorder %s21, 1
      %p128 = por %p126, %p127
      %p130 = scmp.ne.s32.totalorder %s115, %s129
      %p131 = scmp.eq.s32.totalorder %s21, 0
      %p132 = por %p130, %p131
      %s134 = sadd.s32 %s133, 1
      %p137 = scmp.eq.s32.totalorder %s15, 1
      %p138 = scmp.ne.s32.totalorder %s133, %s135
      %p139 = scmp.eq.s32.totalorder %s15, 0
      %p140 = por %p138, %p139
      %p141 = scmp.ne.s32.totalorder %s133, %s135
      %p142 = scmp.eq.s32.totalorder %s20, 1
      %p143 = por %p141, %p142
      %p144 = scmp.ne.s32.totalorder %s135, %s136
      %p145 = scmp.eq.s32.totalorder %s20, 0
      %p146 = por %p144, %p145
      %p147 = scmp.ne.s32.totalorder %s135, %s136
      %p148 = scmp.eq.s32.totalorder %s21, 1
      %p149 = por %p147, %p148
      %p151 = scmp.ne.s32.totalorder %s136, %s150
      %p152 = scmp.eq.s32.totalorder %s21, 0
      %p153 = por %p151, %p152
      %s154 = ssub.s32 %s15, %s22
      %p155 = scmp.eq.s32.totalorder %s154, 0
      %s157 = sadd.s32 %s156, 1
      %s158 = scalar_select %p155, %s156, %s157
      %p161 = pneg %p155
      %p162 = scmp.eq.s32.totalorder %s15, 1
      %p163 = por %p161, %p162
      %p164 = scmp.ne.s32.totalorder %s156, %s159
      %p165 = scmp.eq.s32.totalorder %s15, 0
      %p166 = por %p164, %p165
      %p167 = scmp.ne.s32.totalorder %s156, %s159
      %p168 = scmp.eq.s32.totalorder %s20, 1
      %p169 = por %p167, %p168
      %p170 = scmp.ne.s32.totalorder %s159, %s160
      %p171 = scmp.eq.s32.totalorder %s20, 0
      %p172 = por %p170, %p171
      %p173 = scmp.ne.s32.totalorder %s159, %s160
      %p174 = scmp.eq.s32.totalorder %s21, 1
      %p175 = por %p173, %p174
      %p177 = scmp.ne.s32.totalorder %s160, %s176
      %p178 = scmp.eq.s32.totalorder %s21, 0
      %p179 = por %p177, %p178
      %p180 = scmp.le.s32.totalorder 1, %s15
      %p181 = scmp.lt.s32.totalorder %s15, 3
      %p182 = pnand %p180, %p181
      %p183 = pneg %p182
      // Predicated region
      $region9: #{tpu_custom_call.1} parent=5 // pred_check
        _
      $region10: #{tpu_custom_call.1} parent=5 // pred_check_branch
        %185 = sbr.rel (%p182) target = $region12
      $region11: #{tpu_custom_call.1} parent=5 // pred_region
        %s186 = ssub.s32 %s15, 1
        // Predicated region
        $region13: #{tpu_custom_call.1} parent=11 // pred_check
          %p187 = pneg %p62
        $region14: #{tpu_custom_call.1} parent=11 // pred_check_branch
          %189 = sbr.rel (%p187) target = $region16
        $region15: #{tpu_custom_call.1} parent=11 // pred_region
          _
        $region16: #{tpu_custom_call.1} parent=11 // pred_fallthru
          _
        // Predicated region
        $region17: #{tpu_custom_call.1} parent=11 // pred_check
          %p190 = pneg %p83
        $region18: #{tpu_custom_call.1} parent=11 // pred_check_branch
          %192 = sbr.rel (%p190) target = $region20
        $region19: #{tpu_custom_call.1} parent=11 // pred_region
          _
        $region20: #{tpu_custom_call.1} parent=11 // pred_fallthru
          _
        // Predicated region
        $region21: #{tpu_custom_call.1} parent=11 // pred_check
          %p193 = pneg %p104
        $region22: #{tpu_custom_call.1} parent=11 // pred_check_branch
          %195 = sbr.rel (%p193) target = $region24
        $region23: #{tpu_custom_call.1} parent=11 // pred_region
          _
        $region24: #{tpu_custom_call.1} parent=11 // pred_fallthru
          _
        // Predicated region
        $region25: #{tpu_custom_call.1} parent=11 // pred_check
          %p196 = pneg %p125
        $region26: #{tpu_custom_call.1} parent=11 // pred_check_branch
          %198 = sbr.rel (%p196) target = $region28
        $region27: #{tpu_custom_call.1} parent=11 // pred_region
          _
        $region28: #{tpu_custom_call.1} parent=11 // pred_fallthru
          _
        // Predicated region
        $region29: #{tpu_custom_call.1} parent=11 // pred_check
          %p199 = pneg %p146
        $region30: #{tpu_custom_call.1} parent=11 // pred_check_branch
          %201 = sbr.rel (%p199) target = $region32
        $region31: #{tpu_custom_call.1} parent=11 // pred_region
          _
        $region32: #{tpu_custom_call.1} parent=11 // pred_fallthru
          _
      $region12: #{tpu_custom_call.1} parent=5 // pred_fallthru
        _
      %p202 = scmp.lt.s32.totalorder %s15, 2
      // Predicated region
      $region33: #{tpu_custom_call.1} parent=5 // pred_check
        %p203 = pneg %p202
      $region34: #{tpu_custom_call.1} parent=5 // pred_check_branch
        %205 = sbr.rel (%p203) target = $region36
      $region35: #{tpu_custom_call.1} parent=5 // pred_region
        // Predicated region
        $region37: #{tpu_custom_call.1} parent=35 // pred_check
          %p206 = pneg %p35
        $region38: #{tpu_custom_call.1} parent=35 // pred_check_branch
          %208 = sbr.rel (%p206) target = $region40
        $region39: #{tpu_custom_call.1} parent=35 // pred_region
          %p209 = scmp.lt.s32.totalorder %s15, 1
          %s210 = scalar_select %p209, %s15, 1
          %s211 = smul.addr %s210, 4
          %s212 = smul.addr %s211, 8
          %s213 = scalar_lea.vmem %s0, %s212
        $region40: #{tpu_custom_call.1} parent=35 // pred_fallthru
          _
      $region36: #{tpu_custom_call.1} parent=5 // pred_fallthru
        _
      %p214 = scmp.le.s32.totalorder 1, %s15
      %p215 = scmp.lt.s32.totalorder %s15, 3
      %p216 = pnand %p214, %p215
      %p217 = pneg %p216
      // Predicated region
      $region41: #{tpu_custom_call.1} parent=5 // pred_check
        _
      $region42: #{tpu_custom_call.1} parent=5 // pred_check_branch
        %219 = sbr.rel (%p216) target = $region44
      $region43: #{tpu_custom_call.1} parent=5 // pred_region
        %s220 = ssub.s32 %s15, 1
        %p221 = scmp.lt.s32.totalorder %s20, 1
        %s222 = scalar_select %p221, %s20, 1
        %s223 = smul.addr %s222, 4
        %s224 = smul.addr %s223, 8
        %s225 = scalar_lea.vmem %s0, %s224
        %p226 = pneg %p41
        %p227 = pneg %p38
        %p228 = pneg %p62
        %p229 = pneg %p59
        %p230 = pneg %p83
        %p231 = pneg %p80
        %p232 = pneg %p104
        %p233 = pneg %p101
        %p234 = pneg %p125
        %p235 = pneg %p122
        %p236 = pneg %p146
        %p237 = pneg %p143
        %p238 = pneg %p172
        %p239 = pneg %p169
        %s240 = sand.u32 %s159, 1
        %s241 = scalar_lea.sflag [#allocation3], %s240
        %s242 = sand.u32 %s159, 1
        %s243 = smul.addr %s242, 32
        %s244 = scalar_lea.vmem [#allocation2], %s243
        %p245 = scmp.lt.s32.totalorder %s20, 1
        %s246 = scalar_select %p245, %s20, 1
        %s247 = smul.addr %s246, 4
        %s248 = smul.addr %s247, 8
        %s249 = scalar_lea.vmem %s0, %s248
        %v251 = vld [vmem:[%s249] sm:$0xff]
        %v252 = vld [vmem:[%s249 + $0x8] sm:$0xff]
        %v253 = vld [vmem:[%s249 + $0x10] sm:$0xff]
        %v254 = vld [vmem:[%s249 + $0x18] sm:$0xff]
        %v255 = vlaneseq
        %v256 = vand.u32 %v255, 127
        %vm257 = vcmp.ne.s32.totalorder %v256, 0
        %v258 = vsel %vm257, 1, 0
        %v259 = vcvt.s32.f32 %v258
        %vm260 = vcmp.ne.s32.totalorder %v256, 127
        %v261 = vsel %vm260, 1, 0
        %v262 = vcvt.s32.f32 %v261
        %v263 = vld [vmem:[%s4] sm:$0xf]
        %v264 = vld [vmem:[%s5] sm:$0xff]
        %v265 = vld [vmem:[%s5 + $0x8] sm:$0xff]
        %v266 = vld [vmem:[%s5 + $0x10] sm:$0xff]
        %v267 = vld [vmem:[%s5 + $0x18] sm:$0xff]
        %v268 = vld [vmem:[%s3] sm:$0xff]
        %v269 = vld [vmem:[%s3 + $0x8] sm:$0xff]
        %v270 = vld [vmem:[%s3 + $0x10] sm:$0xff]
        %v271 = vld [vmem:[%s3 + $0x18] sm:$0xff]
        %v272 = vld [vmem:[%s1] sm:$0xf]
        %v273 = vld [vmem:[%s1 + $0x4] sm:$0xf]
        %v274 = vld [vmem:[%s1 + $0x8] sm:$0xf]
        %v275 = vld [vmem:[%s1 + $0xc] sm:$0xf]
        %v276 = vld [vmem:[%s1 + $0x10] sm:$0xf]
        %v277 = vld [vmem:[%s1 + $0x14] sm:$0xf]
        %v278 = vld [vmem:[%s2] sm:$0xf]
        %v279 = vld [vmem:[%s2 + $0x4] sm:$0xf]
        %v280 = vld [vmem:[%s2 + $0x8] sm:$0xf]
        %v281 = vld [vmem:[%s2 + $0xc] sm:$0xf]
        %282 = vadd.xlane.f32.xlu0 %v251
        %v283 = vpop.xlane.xlu0 %282
        %284 = vadd.xlane.f32.xlu0 %v252
        %v285 = vpop.xlane.xlu0 %284
        %286 = vadd.xlane.f32.xlu0 %v253
        %v287 = vpop.xlane.xlu0 %286
        %288 = vadd.xlane.f32.xlu0 %v254
        %v289 = vpop.xlane.xlu0 %288
        %v290 = vadd.f32 %v283, %v285
        %v291 = vadd.f32 %v290, %v287
        %v292 = vadd.f32 %v291, %v289
        %v293 = vrot.slane %v292, 4
        %v294 = vadd.f32 %v292, %v293
        %v295 = vrot.slane %v294, 2
        %v296 = vadd.f32 %v294, %v295
        %v297 = vrot.slane %v296, 1
        %v298 = vadd.f32 %v296, %v297
        %v299 = vmul.f32 %v298, 0.00024414063
        %v300 = vsub.f32 %v251, %v299
        %v301 = vsub.f32 %v252, %v299
        %v302 = vsub.f32 %v253, %v299
        %v303 = vsub.f32 %v254, %v299
        %v304 = vmul.f32 %v300, %v300
        %v305 = vmul.f32 %v301, %v301
        %v306 = vmul.f32 %v302, %v302
        %v307 = vmul.f32 %v303, %v303
        %308 = vadd.xlane.f32.xlu0 %v304
        %v309 = vpop.xlane.xlu0 %308
        %310 = vadd.xlane.f32.xlu0 %v305
        %v311 = vpop.xlane.xlu0 %310
        %312 = vadd.xlane.f32.xlu0 %v306
        %v313 = vpop.xlane.xlu0 %312
        %314 = vadd.xlane.f32.xlu0 %v307
        %v315 = vpop.xlane.xlu0 %314
        %v316 = vadd.f32 %v309, %v311
        %v317 = vadd.f32 %v316, %v313
        %v318 = vadd.f32 %v317, %v315
        %v319 = vrot.slane %v318, 4
        %v320 = vadd.f32 %v318, %v319
        %v321 = vrot.slane %v320, 2
        %v322 = vadd.f32 %v320, %v321
        %v323 = vrot.slane %v322, 1
        %v324 = vadd.f32 %v322, %v323
        %v325 = vmul.f32 %v324, 0.00024414063
        %v326 = vadd.f32 %v325, 1e-05
        %v327 = vrsqrt.pop %v326
        %v328 = vmul.f32 %v327, %v268
        %v329 = vmul.f32 %v327, %v269
        %v330 = vmul.f32 %v327, %v270
        %v331 = vmul.f32 %v327, %v271
        %333 = vset.pattern.permute.xlu0 0
        %334 = vperm.xlu0 %333, %v328
        %v335 = vpop.permute.xlu0 %334
        %338 = vset.pattern.permute.xlu0 0
        %339 = vperm.xlu0 %338, %v329
        %v340 = vpop.permute.xlu0 %339
        %343 = vset.pattern.permute.xlu0 0
        %344 = vperm.xlu0 %343, %v330
        %v345 = vpop.permute.xlu0 %344
        %348 = vset.pattern.permute.xlu0 0
        %349 = vperm.xlu0 %348, %v331
        %v350 = vpop.permute.xlu0 %349
        %v352 = vmul.f32 %v300, %v335
        %v353 = vmul.f32 %v301, %v340
        %v354 = vmul.f32 %v302, %v345
        %v355 = vmul.f32 %v303, %v350
        %357 = vset.pattern.permute.xlu0 1
        %358 = vperm.xlu0 %357, %v268
        %v359 = vpop.permute.xlu0 %358
        %362 = vset.pattern.permute.xlu0 1
        %363 = vperm.xlu0 %362, %v269
        %v364 = vpop.permute.xlu0 %363
        %367 = vset.pattern.permute.xlu0 1
        %368 = vperm.xlu0 %367, %v270
        %v369 = vpop.permute.xlu0 %368
        %372 = vset.pattern.permute.xlu0 1
        %373 = vperm.xlu0 %372, %v271
        %v374 = vpop.permute.xlu0 %373
        %v376 = vadd.f32 %v352, %v359
        %v377 = vadd.f32 %v353, %v364
        %v378 = vadd.f32 %v354, %v369
        %v379 = vadd.f32 %v355, %v374
        %380 = vrot.lane.b32.xlu0 %v376, 1
        %v381 = vpop.permute.xlu0 %380
        %382 = vrot.lane.b32.xlu0 %v377, 1
        %v383 = vpop.permute.xlu0 %382
        %384 = vrot.lane.b32.xlu0 %v378, 1
        %v385 = vpop.permute.xlu0 %384
        %386 = vrot.lane.b32.xlu0 %v379, 1
        %v387 = vpop.permute.xlu0 %386
        %v388 = vmul.f32 %v381, %v259
        %v389 = vmul.f32 %v383, %v259
        %v390 = vmul.f32 %v385, %v259
        %v391 = vmul.f32 %v387, %v259
        %v392 = vpack.c.bf16 %v389, %v388
        %v393 = vpack.c.bf16 %v391, %v390
        %v394 = vpack.c.bf16 %v377, %v376
        %v395 = vpack.c.bf16 %v379, %v378
        %v398 = vunpack.c.l.b16 %v274
        %v399 = vunpack.c.l.b16 %v275
        %v400 = vpack.c.b16 %v399, %v398
        %vm401 = vcmask 261120
        %v403 = vsel %vm401, %v400, 0
        %405 = vmatprep.subr.bf16.mxu0 0
        %406 = vmatpush1.bf16.msra.mxu0 %v394
        %407 = vmatprep.subr.bf16.mxu0 0
        %408 = vmatpush1.bf16.msra.mxu0 %v395
        %409 = vmatprep.subr.bf16.mxu0 0
        %410 = vmatpush1.bf16.msra.mxu0 0
        %411 = vmatprep.subr.bf16.mxu0 0
        %412 = vmatpush1.bf16.msra.mxu0 0
        %413 = vmatprep.subr.bf16.mxu0 0
        %414 = vmatpush1.bf16.msra.mxu0 0
        %415 = vmatprep.subr.bf16.mxu0 0
        %416 = vmatpush1.bf16.msra.mxu0 0
        %417 = vmatprep.subr.bf16.mxu0 0
        %418 = vmatpush1.bf16.msra.mxu0 0
        %419 = vmatprep.subr.bf16.mxu0 0
        %420 = vmatpush1.bf16.msra.mxu0 0
        %421 = vmatprep.subr.bf16.mxu0 0
        %422 = vmatpush1.bf16.msra.mxu0 0
        %423 = vmatprep.subr.bf16.mxu0 0
        %424 = vmatpush1.bf16.msra.mxu0 0
        %425 = vmatprep.subr.bf16.mxu0 0
        %426 = vmatpush1.bf16.msra.mxu0 0
        %427 = vmatprep.subr.bf16.mxu0 0
        %428 = vmatpush1.bf16.msra.mxu0 0
        %429 = vmatprep.subr.bf16.mxu0 0
        %430 = vmatpush1.bf16.msra.mxu0 0
        %431 = vmatprep.subr.bf16.mxu0 0
        %432 = vmatpush1.bf16.msra.mxu0 0
        %433 = vmatprep.subr.bf16.mxu0 0
        %434 = vmatpush1.bf16.msra.mxu0 0
        %435 = vmatprep.subr.bf16.mxu0 0
        %436 = vmatpush1.bf16.msra.mxu0 0
        %437 = vmatprep.mubr.bf16.mxu0 0
        %438 = vmatmul.mubr.bf16.gmra.mrb[0].mxu0 %v403
        %v439 = vpop.f32.mrb[0].mxu0
        %v440 = vadd.f32 0.0, %v439
        %v441 = vpop.f32.mrb[0].mxu0
        %v442 = vpop.f32.mrb[0].mxu0
        %v443 = vadd.f32 0.0, %v442
        %v444 = vpop.f32.mrb[0].mxu0
        %445 = vdwg.mxu0
        %v448 = vunpack.c.l.b16 %v272
        %v449 = vunpack.c.l.b16 %v273
        %v450 = vpack.c.b16 %v449, %v448
        %v452 = vsel %vm401, %v450, 0
        %454 = vmatprep.subr.bf16.mxu0 0
        %455 = vmatpush1.bf16.msra.mxu0 %v392
        %456 = vmatprep.subr.bf16.mxu0 0
        %457 = vmatpush1.bf16.msra.mxu0 %v393
        %458 = vmatprep.subr.bf16.mxu0 0
        %459 = vmatpush1.bf16.msra.mxu0 0
        %460 = vmatprep.subr.bf16.mxu0 0
        %461 = vmatpush1.bf16.msra.mxu0 0
        %462 = vmatprep.subr.bf16.mxu0 0
        %463 = vmatpush1.bf16.msra.mxu0 0
        %464 = vmatprep.subr.bf16.mxu0 0
        %465 = vmatpush1.bf16.msra.mxu0 0
        %466 = vmatprep.subr.bf16.mxu0 0
        %467 = vmatpush1.bf16.msra.mxu0 0
        %468 = vmatprep.subr.bf16.mxu0 0
        %469 = vmatpush1.bf16.msra.mxu0 0
        %470 = vmatprep.subr.bf16.mxu0 0
        %471 = vmatpush1.bf16.msra.mxu0 0
        %472 = vmatprep.subr.bf16.mxu0 0
        %473 = vmatpush1.bf16.msra.mxu0 0
        %474 = vmatprep.subr.bf16.mxu0 0
        %475 = vmatpush1.bf16.msra.mxu0 0
        %476 = vmatprep.subr.bf16.mxu0 0
        %477 = vmatpush1.bf16.msra.mxu0 0
        %478 = vmatprep.subr.bf16.mxu0 0
        %479 = vmatpush1.bf16.msra.mxu0 0
        %480 = vmatprep.subr.bf16.mxu0 0
        %481 = vmatpush1.bf16.msra.mxu0 0
        %482 = vmatprep.subr.bf16.mxu0 0
        %483 = vmatpush1.bf16.msra.mxu0 0
        %484 = vmatprep.subr.bf16.mxu0 0
        %485 = vmatpush1.bf16.msra.mxu0 0
        %486 = vmatprep.mubr.bf16.mxu0 0
        %487 = vmatmul.mubr.bf16.gmra.mrb[0].mxu0 %v452
        %v488 = vpop.f32.mrb[0].mxu0
        %v489 = vadd.f32 %v440, %v488
        %v490 = vpop.f32.mrb[0].mxu0
        %v491 = vpop.f32.mrb[0].mxu0
        %v492 = vadd.f32 %v443, %v491
        %v493 = vpop.f32.mrb[0].mxu0
        %494 = vdwg.mxu0
        %495 = vrot.lane.b32.xlu0 %v376, 127
        %v496 = vpop.permute.xlu0 %495
        %497 = vrot.lane.b32.xlu0 %v377, 127
        %v498 = vpop.permute.xlu0 %497
        %499 = vrot.lane.b32.xlu0 %v378, 127
        %v500 = vpop.permute.xlu0 %499
        %501 = vrot.lane.b32.xlu0 %v379, 127
        %v502 = vpop.permute.xlu0 %501
        %v503 = vmul.f32 %v496, %v262
        %v504 = vmul.f32 %v498, %v262
        %v505 = vmul.f32 %v500, %v262
        %v506 = vmul.f32 %v502, %v262
        %v507 = vpack.c.bf16 %v504, %v503
        %v508 = vpack.c.bf16 %v506, %v505
        %v511 = vunpack.c.l.b16 %v276
        %v512 = vunpack.c.l.b16 %v277
        %v513 = vpack.c.b16 %v512, %v511
        %v515 = vsel %vm401, %v513, 0
        %517 = vmatprep.subr.bf16.mxu0 0
        %518 = vmatpush1.bf16.msra.mxu0 %v507
        %519 = vmatprep.subr.bf16.mxu0 0
        %520 = vmatpush1.bf16.msra.mxu0 %v508
        %521 = vmatprep.subr.bf16.mxu0 0
        %522 = vmatpush1.bf16.msra.mxu0 0
        %523 = vmatprep.subr.bf16.mxu0 0
        %524 = vmatpush1.bf16.msra.mxu0 0
        %525 = vmatprep.subr.bf16.mxu0 0
        %526 = vmatpush1.bf16.msra.mxu0 0
        %527 = vmatprep.subr.bf16.mxu0 0
        %528 = vmatpush1.bf16.msra.mxu0 0
        %529 = vmatprep.subr.bf16.mxu0 0
        %530 = vmatpush1.bf16.msra.mxu0 0
        %531 = vmatprep.subr.bf16.mxu0 0
        %532 = vmatpush1.bf16.msra.mxu0 0
        %533 = vmatprep.subr.bf16.mxu0 0
        %534 = vmatpush1.bf16.msra.mxu0 0
        %535 = vmatprep.subr.bf16.mxu0 0
        %536 = vmatpush1.bf16.msra.mxu0 0
        %537 = vmatprep.subr.bf16.mxu0 0
        %538 = vmatpush1.bf16.msra.mxu0 0
        %539 = vmatprep.subr.bf16.mxu0 0
        %540 = vmatpush1.bf16.msra.mxu0 0
        %541 = vmatprep.subr.bf16.mxu0 0
        %542 = vmatpush1.bf16.msra.mxu0 0
        %543 = vmatprep.subr.bf16.mxu0 0
        %544 = vmatpush1.bf16.msra.mxu0 0
        %545 = vmatprep.subr.bf16.mxu0 0
        %546 = vmatpush1.bf16.msra.mxu0 0
        %547 = vmatprep.subr.bf16.mxu0 0
        %548 = vmatpush1.bf16.msra.mxu0 0
        %549 = vmatprep.mubr.bf16.mxu0 0
        %550 = vmatmul.mubr.bf16.gmra.mrb[0].mxu0 %v515
        %v551 = vpop.f32.mrb[0].mxu0
        %v552 = vadd.f32 0.0, %v551
        %v553 = vpop.f32.mrb[0].mxu0
        %v554 = vpop.f32.mrb[0].mxu0
        %v555 = vadd.f32 0.0, %v554
        %v556 = vpop.f32.mrb[0].mxu0
        %557 = vdwg.mxu0
        %v558 = vadd.f32 %v489, %v552
        %v559 = vadd.f32 %v492, %v555
        %560 = vset.pattern.permute.xlu0 2
        %561 = vperm.xlu0 %560, %v268
        %v562 = vpop.permute.xlu0 %561
        %564 = vset.pattern.permute.xlu0 2
        %565 = vperm.xlu0 %564, %v269
        %v566 = vpop.permute.xlu0 %565
        %v568 = vadd.f32 %v558, %v562
        %v569 = vadd.f32 %v559, %v566
        %v570 = vxor.u32 %v569, 2147483648
        %v571 = vmul.f32 %v570, 1.442695
        %v572 = vpow.pop %v571
        %v573 = vadd.f32 %v572, 1.0
        %v574 = vrcp.pop %v573
        %v575 = vmul.f32 1.0, %v574
        %v576 = vmul.f32 %v568, %v575
        %577 = vrot.lane.b32.xlu0 %v576, 1
        %v578 = vpop.permute.xlu0 %577
        %v579 = vmul.f32 %v578, %v259
        %580 = vset.pattern.permute.xlu0 3
        %581 = vperm.xlu0 %580, %v268
        %v582 = vpop.permute.xlu0 %581
        %v584 = vmul.f32 %v582, %v579
        %585 = vset.pattern.permute.xlu0 4
        %586 = vperm.xlu0 %585, %v268
        %v587 = vpop.permute.xlu0 %586
        %v589 = vmul.f32 %v587, %v576
        %v590 = vadd.f32 %v584, %v589
        %591 = vrot.lane.b32.xlu0 %v576, 127
        %v592 = vpop.permute.xlu0 %591
        %v593 = vmul.f32 %v592, %v262
        %594 = vset.pattern.permute.xlu0 5
        %595 = vperm.xlu0 %594, %v268
        %v596 = vpop.permute.xlu0 %595
        %v598 = vmul.f32 %v596, %v593
        %v599 = vadd.f32 %v590, %v598
        %600 = vset.pattern.permute.xlu0 6
        %601 = vperm.xlu0 %600, %v268
        %v602 = vpop.permute.xlu0 %601
        %v604 = vadd.f32 %v599, %v602
        %605 = vadd.xlane.f32.xlu0 %v604
        %v606 = vpop.xlane.xlu0 %605
        %v607 = vrot.slane %v606, 4
        %v608 = vadd.f32 %v606, %v607
        %v609 = vrot.slane %v608, 2
        %v610 = vadd.f32 %v608, %v609
        %v611 = vrot.slane %v610, 1
        %v612 = vadd.f32 %v610, %v611
        %v613 = vmul.f32 %v612, 0.0009765625
        %v614 = vsub.f32 %v604, %v613
        %v615 = vmul.f32 %v614, %v614
        %616 = vadd.xlane.f32.xlu0 %v615
        %v617 = vpop.xlane.xlu0 %616
        %v618 = vrot.slane %v617, 4
        %v619 = vadd.f32 %v617, %v618
        %v620 = vrot.slane %v619, 2
        %v621 = vadd.f32 %v619, %v620
        %v622 = vrot.slane %v621, 1
        %v623 = vadd.f32 %v621, %v622
        %v624 = vmul.f32 %v623, 0.0009765625
        %v625 = vadd.f32 %v624, 1e-05
        %v626 = vrsqrt.pop %v625
        %v627 = vmul.f32 %v626, %v268
        %629 = vset.pattern.permute.xlu0 7
        %630 = vperm.xlu0 %629, %v627
        %v631 = vpop.permute.xlu0 %630
        %v633 = vmul.f32 %v614, %v631
        %634 = vset.pattern.permute.xlu0 8
        %635 = vperm.xlu0 %634, %v268
        %v636 = vpop.permute.xlu0 %635
        %v638 = vadd.f32 %v633, %v636
        %v639 = vxor.u32 %v638, 2147483648
        %v640 = vmul.f32 %v639, 1.442695
        %v641 = vpow.pop %v640
        %v642 = vadd.f32 %v641, 1.0
        %v643 = vrcp.pop %v642
        %v644 = vmul.f32 1.0, %v643
        %v645 = vmul.f32 %v638, %v644
        %v646 = vpack.c.bf16 %v645, %v645
        %647 = vset.pattern.permute.xlu0 9
        %648 = vperm.xlu0 %647, %v268
        %v649 = vpop.permute.xlu0 %648
        %651 = vset.pattern.permute.xlu0 9
        %652 = vperm.xlu0 %651, %v269
        %v653 = vpop.permute.xlu0 %652
        %655 = vset.pattern.permute.xlu0 9
        %656 = vperm.xlu0 %655, %v270
        %v657 = vpop.permute.xlu0 %656
        %659 = vset.pattern.permute.xlu0 9
        %660 = vperm.xlu0 %659, %v271
        %v661 = vpop.permute.xlu0 %660
        %v667 = vunpack.c.l.b16 %v278
        %v668 = vunpack.c.l.b16 %v279
        %v669 = vunpack.c.l.b16 %v280
        %v670 = vunpack.c.l.b16 %v281
        %v671 = vpack.c.b16 %v668, %v667
        %v672 = vpack.c.b16 %v670, %v669
        %vm673 = vcmask 64512
        %v675 = vsel %vm673, %v671, 0
        %v678 = vsel %vm673, %v672, 0
        %vm680 = vcmask 1043456
        %v682 = vsel %vm680, %v646, 0
        %684 = vmatprep.subr.bf16.mxu0 0
        %685 = vmatpush1.bf16.msra.mxu0 %v682
        %686 = vmatprep.subr.bf16.mxu0 0
        %687 = vmatpush1.bf16.msra.mxu0 0
        %688 = vmatprep.subr.bf16.mxu0 0
        %689 = vmatpush1.bf16.msra.mxu0 0
        %690 = vmatprep.subr.bf16.mxu0 0
        %691 = vmatpush1.bf16.msra.mxu0 0
        %692 = vmatprep.subr.bf16.mxu0 0
        %693 = vmatpush1.bf16.msra.mxu0 0
        %694 = vmatprep.subr.bf16.mxu0 0
        %695 = vmatpush1.bf16.msra.mxu0 0
        %696 = vmatprep.subr.bf16.mxu0 0
        %697 = vmatpush1.bf16.msra.mxu0 0
        %698 = vmatprep.subr.bf16.mxu0 0
        %699 = vmatpush1.bf16.msra.mxu0 0
        %700 = vmatprep.subr.bf16.mxu0 0
        %701 = vmatpush1.bf16.msra.mxu0 0
        %702 = vmatprep.subr.bf16.mxu0 0
        %703 = vmatpush1.bf16.msra.mxu0 0
        %704 = vmatprep.subr.bf16.mxu0 0
        %705 = vmatpush1.bf16.msra.mxu0 0
        %706 = vmatprep.subr.bf16.mxu0 0
        %707 = vmatpush1.bf16.msra.mxu0 0
        %708 = vmatprep.subr.bf16.mxu0 0
        %709 = vmatpush1.bf16.msra.mxu0 0
        %710 = vmatprep.subr.bf16.mxu0 0
        %711 = vmatpush1.bf16.msra.mxu0 0
        %712 = vmatprep.subr.bf16.mxu0 0
        %713 = vmatpush1.bf16.msra.mxu0 0
        %714 = vmatprep.subr.bf16.mxu0 0
        %715 = vmatpush1.bf16.msra.mxu0 0
        %716 = vmatprep.mubr.bf16.mxu0 0
        %717 = vmatmul.mubr.bf16.gmra.mrb[0].mxu0 %v675
        %v718 = vpop.f32.mrb[0].mxu0
        %v719 = vadd.f32 %v649, %v718
        %v720 = vpop.f32.mrb[0].mxu0
        %v721 = vpop.f32.mrb[0].mxu0
        %v722 = vadd.f32 %v653, %v721
        %v723 = vpop.f32.mrb[0].mxu0
        %724 = vmatprep.mubr.bf16.mxu0 0
        %725 = vmatmul.mubr.bf16.gmra.mrb[0].mxu0 %v678
        %v726 = vpop.f32.mrb[0].mxu0
        %v727 = vadd.f32 %v657, %v726
        %v728 = vpop.f32.mrb[0].mxu0
        %v729 = vpop.f32.mrb[0].mxu0
        %v730 = vadd.f32 %v661, %v729
        %v731 = vpop.f32.mrb[0].mxu0
        %732 = vdwg.mxu0
        %733 = vadd.xlane.f32.xlu0 %v719
        %v734 = vpop.xlane.xlu0 %733
        %735 = vadd.xlane.f32.xlu0 %v722
        %v736 = vpop.xlane.xlu0 %735
        %737 = vadd.xlane.f32.xlu0 %v727
        %v738 = vpop.xlane.xlu0 %737
        %739 = vadd.xlane.f32.xlu0 %v730
        %v740 = vpop.xlane.xlu0 %739
        %v741 = vmul.f32 %v734, 0.0078125
        %v742 = vmul.f32 %v736, 0.0078125
        %v743 = vmul.f32 %v738, 0.0078125
        %v744 = vmul.f32 %v740, 0.0078125
        %746 = vrot.lane.b32.xlu0 %v263, 96
        %v747 = vpop.permute.xlu0 %746
        %v749 = vsel %vm401, %v263, 0
        %751 = vmatprep.subr.mxu0 0.0
        %752 = vmatpush1.msra.mxu0 %v741
        %753 = vmatprep.subr.mxu0 0.0
        %754 = vmatpush1.msra.mxu0 %v742
        %755 = vmatprep.subr.mxu0 0.0
        %756 = vmatpush1.msra.mxu0 %v743
        %757 = vmatprep.subr.mxu0 0.0
        %758 = vmatpush1.msra.mxu0 %v744
        %759 = vmatprep.subr.mxu0 0.0
        %760 = vmatpush1.msra.mxu0 0.0
        %761 = vmatprep.subr.mxu0 0.0
        %762 = vmatpush1.msra.mxu0 0.0
        %763 = vmatprep.subr.mxu0 0.0
        %764 = vmatpush1.msra.mxu0 0.0
        %765 = vmatprep.subr.mxu0 0.0
        %766 = vmatpush1.msra.mxu0 0.0
        %767 = vmatprep.subr.mxu0 0.0
        %768 = vmatpush1.msra.mxu0 0.0
        %769 = vmatprep.subr.mxu0 0.0
        %770 = vmatpush1.msra.mxu0 0.0
        %771 = vmatprep.subr.mxu0 0.0
        %772 = vmatpush1.msra.mxu0 0.0
        %773 = vmatprep.subr.mxu0 0.0
        %774 = vmatpush1.msra.mxu0 0.0
        %775 = vmatprep.subr.mxu0 0.0
        %776 = vmatpush1.msra.mxu0 0.0
        %777 = vmatprep.subr.mxu0 0.0
        %778 = vmatpush1.msra.mxu0 0.0
        %779 = vmatprep.subr.mxu0 0.0
        %780 = vmatpush1.msra.mxu0 0.0
        %781 = vmatprep.subr.mxu0 0.0
        %782 = vmatpush1.msra.mxu0 0.0
        %783 = vmatprep.subr.mxu0 0.0
        %784 = vmatpush1.msra.mxu0 0.0
        %785 = vmatprep.subr.mxu0 0.0
        %786 = vmatpush1.msra.mxu0 0.0
        %787 = vmatprep.subr.mxu0 0.0
        %788 = vmatpush1.msra.mxu0 0.0
        %789 = vmatprep.subr.mxu0 0.0
        %790 = vmatpush1.msra.mxu0 0.0
        %791 = vmatprep.subr.mxu0 0.0
        %792 = vmatpush1.msra.mxu0 0.0
        %793 = vmatprep.subr.mxu0 0.0
        %794 = vmatpush1.msra.mxu0 0.0
        %795 = vmatprep.subr.mxu0 0.0
        %796 = vmatpush1.msra.mxu0 0.0
        %797 = vmatprep.subr.mxu0 0.0
        %798 = vmatpush1.msra.mxu0 0.0
        %799 = vmatprep.subr.mxu0 0.0
        %800 = vmatpush1.msra.mxu0 0.0
        %801 = vmatprep.subr.mxu0 0.0
        %802 = vmatpush1.msra.mxu0 0.0
        %803 = vmatprep.subr.mxu0 0.0
        %804 = vmatpush1.msra.mxu0 0.0
        %805 = vmatprep.subr.mxu0 0.0
        %806 = vmatpush1.msra.mxu0 0.0
        %807 = vmatprep.subr.mxu0 0.0
        %808 = vmatpush1.msra.mxu0 0.0
        %809 = vmatprep.subr.mxu0 0.0
        %810 = vmatpush1.msra.mxu0 0.0
        %811 = vmatprep.subr.mxu0 0.0
        %812 = vmatpush1.msra.mxu0 0.0
        %813 = vmatprep.subr.mxu0 0.0
        %814 = vmatpush1.msra.mxu0 0.0
        %815 = vmatprep.mubr.f32.mxu0 0.0
        %816 = vmatmul.mubr.f32.gmra.mrb[0].mxu0 %v749
        %v817 = vpop.f32.mrb[0].mxu0
        %v818 = vadd.f32 %v747, %v817
        %v819 = vpop.f32.mrb[0].mxu0
        %820 = vdwg.mxu0
        %v821 = vmax.f32 %v818, 0.0
        %826 = vrot.lane.b32.xlu0 %v264, 124
        %v827 = vpop.permute.xlu0 %826
        %828 = vrot.lane.b32.xlu0 %v265, 124
        %v829 = vpop.permute.xlu0 %828
        %830 = vrot.lane.b32.xlu0 %v266, 124
        %v831 = vpop.permute.xlu0 %830
        %832 = vrot.lane.b32.xlu0 %v267, 124
        %v833 = vpop.permute.xlu0 %832
        %vm838 = vcmask 31744
        %v839 = vsel %vm838, %v264, 0
        %v841 = vsel %vm838, %v265, 0
        %v843 = vsel %vm838, %v266, 0
        %v845 = vsel %vm838, %v267, 0
        %v848 = vsel %vm680, %v821, 0
        %850 = vmatprep.subr.mxu0 0.0
        %851 = vmatpush1.msra.mxu0 %v848
        %852 = vmatprep.subr.mxu0 0.0
        %853 = vmatpush1.msra.mxu0 0.0
        %854 = vmatprep.subr.mxu0 0.0
        %855 = vmatpush1.msra.mxu0 0.0
        %856 = vmatprep.subr.mxu0 0.0
        %857 = vmatpush1.msra.mxu0 0.0
        %858 = vmatprep.subr.mxu0 0.0
        %859 = vmatpush1.msra.mxu0 0.0
        %860 = vmatprep.subr.mxu0 0.0
        %861 = vmatpush1.msra.mxu0 0.0
        %862 = vmatprep.subr.mxu0 0.0
        %863 = vmatpush1.msra.mxu0 0.0
        %864 = vmatprep.subr.mxu0 0.0
        %865 = vmatpush1.msra.mxu0 0.0
        %866 = vmatprep.subr.mxu0 0.0
        %867 = vmatpush1.msra.mxu0 0.0
        %868 = vmatprep.subr.mxu0 0.0
        %869 = vmatpush1.msra.mxu0 0.0
        %870 = vmatprep.subr.mxu0 0.0
        %871 = vmatpush1.msra.mxu0 0.0
        %872 = vmatprep.subr.mxu0 0.0
        %873 = vmatpush1.msra.mxu0 0.0
        %874 = vmatprep.subr.mxu0 0.0
        %875 = vmatpush1.msra.mxu0 0.0
        %876 = vmatprep.subr.mxu0 0.0
        %877 = vmatpush1.msra.mxu0 0.0
        %878 = vmatprep.subr.mxu0 0.0
        %879 = vmatpush1.msra.mxu0 0.0
        %880 = vmatprep.subr.mxu0 0.0
        %881 = vmatpush1.msra.mxu0 0.0
        %882 = vmatprep.subr.mxu0 0.0
        %883 = vmatpush1.msra.mxu0 0.0
        %884 = vmatprep.subr.mxu0 0.0
        %885 = vmatpush1.msra.mxu0 0.0
        %886 = vmatprep.subr.mxu0 0.0
        %887 = vmatpush1.msra.mxu0 0.0
        %888 = vmatprep.subr.mxu0 0.0
        %889 = vmatpush1.msra.mxu0 0.0
        %890 = vmatprep.subr.mxu0 0.0
        %891 = vmatpush1.msra.mxu0 0.0
        %892 = vmatprep.subr.mxu0 0.0
        %893 = vmatpush1.msra.mxu0 0.0
        %894 = vmatprep.subr.mxu0 0.0
        %895 = vmatpush1.msra.mxu0 0.0
        %896 = vmatprep.subr.mxu0 0.0
        %897 = vmatpush1.msra.mxu0 0.0
        %898 = vmatprep.subr.mxu0 0.0
        %899 = vmatpush1.msra.mxu0 0.0
        %900 = vmatprep.subr.mxu0 0.0
        %901 = vmatpush1.msra.mxu0 0.0
        %902 = vmatprep.subr.mxu0 0.0
        %903 = vmatpush1.msra.mxu0 0.0
        %904 = vmatprep.subr.mxu0 0.0
        %905 = vmatpush1.msra.mxu0 0.0
        %906 = vmatprep.subr.mxu0 0.0
        %907 = vmatpush1.msra.mxu0 0.0
        %908 = vmatprep.subr.mxu0 0.0
        %909 = vmatpush1.msra.mxu0 0.0
        %910 = vmatprep.subr.mxu0 0.0
        %911 = vmatpush1.msra.mxu0 0.0
        %912 = vmatprep.subr.mxu0 0.0
        %913 = vmatpush1.msra.mxu0 0.0
        %914 = vmatprep.mubr.f32.mxu0 0.0
        %915 = vmatmul.mubr.f32.gmra.mrb[0].mxu0 %v839
        %v916 = vpop.f32.mrb[0].mxu0
        %v917 = vadd.f32 %v827, %v916
        %v918 = vpop.f32.mrb[0].mxu0
        %919 = vmatprep.mubr.f32.mxu0 0.0
        %920 = vmatmul.mubr.f32.gmra.mrb[0].mxu0 %v841
        %v921 = vpop.f32.mrb[0].mxu0
        %v922 = vadd.f32 %v829, %v921
        %v923 = vpop.f32.mrb[0].mxu0
        %924 = vmatprep.mubr.f32.mxu0 0.0
        %925 = vmatmul.mubr.f32.gmra.mrb[0].mxu0 %v843
        %v926 = vpop.f32.mrb[0].mxu0
        %v927 = vadd.f32 %v831, %v926
        %v928 = vpop.f32.mrb[0].mxu0
        %929 = vmatprep.mubr.f32.mxu0 0.0
        %930 = vmatmul.mubr.f32.gmra.mrb[0].mxu0 %v845
        %v931 = vpop.f32.mrb[0].mxu0
        %v932 = vadd.f32 %v833, %v931
        %v933 = vpop.f32.mrb[0].mxu0
        %934 = vdwg.mxu0
        %v935 = vxor.u32 %v917, 2147483648
        %v936 = vxor.u32 %v922, 2147483648
        %v937 = vxor.u32 %v927, 2147483648
        %v938 = vxor.u32 %v932, 2147483648
        %v939 = vmul.f32 %v935, 1.442695
        %v940 = vpow.pop %v939
        %v941 = vmul.f32 %v936, 1.442695
        %v942 = vpow.pop %v941
        %v943 = vmul.f32 %v937, 1.442695
        %v944 = vpow.pop %v943
        %v945 = vmul.f32 %v938, 1.442695
        %v946 = vpow.pop %v945
        %v947 = vadd.f32 %v940, 1.0
        %v948 = vadd.f32 %v942, 1.0
        %v949 = vadd.f32 %v944, 1.0
        %v950 = vadd.f32 %v946, 1.0
        %v951 = vrcp.pop %v947
        %v952 = vmul.f32 1.0, %v951
        %v953 = vrcp.pop %v948
        %v954 = vmul.f32 1.0, %v953
        %v955 = vrcp.pop %v949
        %v956 = vmul.f32 1.0, %v955
        %v957 = vrcp.pop %v950
        %v958 = vmul.f32 1.0, %v957
        %960 = vset.pattern.permute.xlu0 0
        %961 = vperm.xlu0 %960, %v952
        %v962 = vpop.permute.xlu0 %961
        %965 = vset.pattern.permute.xlu0 0
        %966 = vperm.xlu0 %965, %v954
        %v967 = vpop.permute.xlu0 %966
        %970 = vset.pattern.permute.xlu0 0
        %971 = vperm.xlu0 %970, %v956
        %v972 = vpop.permute.xlu0 %971
        %975 = vset.pattern.permute.xlu0 0
        %976 = vperm.xlu0 %975, %v958
        %v977 = vpop.permute.xlu0 %976
        %v979 = vmul.f32 %v719, %v962
        %v980 = vmul.f32 %v722, %v967
        %v981 = vmul.f32 %v727, %v972
        %v982 = vmul.f32 %v730, %v977
        %v983 = vadd.f32 %v251, %v979
        %v984 = vadd.f32 %v252, %v980
        %v985 = vadd.f32 %v253, %v981
        %v986 = vadd.f32 %v254, %v982
        %s987 = scalar_lea.vmem %s3, 32
        %v988 = vld [vmem:[%s987] sm:$0xff]
        %v989 = vld [vmem:[%s987 + $0x8] sm:$0xff]
        %v990 = vld [vmem:[%s987 + $0x10] sm:$0xff]
        %v991 = vld [vmem:[%s987 + $0x18] sm:$0xff]
        %s992 = scalar_lea.vmem %s1, 24
        %v993 = vld [vmem:[%s992] sm:$0xf]
        %v994 = vld [vmem:[%s992 + $0x4] sm:$0xf]
        %v995 = vld [vmem:[%s992 + $0x8] sm:$0xf]
        %v996 = vld [vmem:[%s992 + $0xc] sm:$0xf]
        %v997 = vld [vmem:[%s992 + $0x10] sm:$0xf]
        %v998 = vld [vmem:[%s992 + $0x14] sm:$0xf]
        %s999 = scalar_lea.vmem %s2, 16
        %v1000 = vld [vmem:[%s999] sm:$0xf]
        %v1001 = vld [vmem:[%s999 + $0x4] sm:$0xf]
        %v1002 = vld [vmem:[%s999 + $0x8] sm:$0xf]
        %v1003 = vld [vmem:[%s999 + $0xc] sm:$0xf]
        %1004 = vadd.xlane.f32.xlu0 %v983
        %v1005 = vpop.xlane.xlu0 %1004
        %1006 = vadd.xlane.f32.xlu0 %v984
        %v1007 = vpop.xlane.xlu0 %1006
        %1008 = vadd.xlane.f32.xlu0 %v985
        %v1009 = vpop.xlane.xlu0 %1008
        %1010 = vadd.xlane.f32.xlu0 %v986
        %v1011 = vpop.xlane.xlu0 %1010
        %v1012 = vadd.f32 %v1005, %v1007
        %v1013 = vadd.f32 %v1012, %v1009
        %v1014 = vadd.f32 %v1013, %v1011
        %v1015 = vrot.slane %v1014, 4
        %v1016 = vadd.f32 %v1014, %v1015
        %v1017 = vrot.slane %v1016, 2
        %v1018 = vadd.f32 %v1016, %v1017
        %v1019 = vrot.slane %v1018, 1
        %v1020 = vadd.f32 %v1018, %v1019
        %v1021 = vmul.f32 %v1020, 0.00024414063
        %v1022 = vsub.f32 %v983, %v1021
        %v1023 = vsub.f32 %v984, %v1021
        %v1024 = vsub.f32 %v985, %v1021
        %v1025 = vsub.f32 %v986, %v1021
        %v1026 = vmul.f32 %v1022, %v1022
        %v1027 = vmul.f32 %v1023, %v1023
        %v1028 = vmul.f32 %v1024, %v1024
        %v1029 = vmul.f32 %v1025, %v1025
        %1030 = vadd.xlane.f32.xlu0 %v1026
        %v1031 = vpop.xlane.xlu0 %1030
        %1032 = vadd.xlane.f32.xlu0 %v1027
        %v1033 = vpop.xlane.xlu0 %1032
        %1034 = vadd.xlane.f32.xlu0 %v1028
        %v1035 = vpop.xlane.xlu0 %1034
        %1036 = vadd.xlane.f32.xlu0 %v1029
        %v1037 = vpop.xlane.xlu0 %1036
        %v1038 = vadd.f32 %v1031, %v1033
        %v1039 = vadd.f32 %v1038, %v1035
        %v1040 = vadd.f32 %v1039, %v1037
        %v1041 = vrot.slane %v1040, 4
        %v1042 = vadd.f32 %v1040, %v1041
        %v1043 = vrot.slane %v1042, 2
        %v1044 = vadd.f32 %v1042, %v1043
        %v1045 = vrot.slane %v1044, 1
        %v1046 = vadd.f32 %v1044, %v1045
        %v1047 = vmul.f32 %v1046, 0.00024414063
        %v1048 = vadd.f32 %v1047, 1e-05
        %v1049 = vrsqrt.pop %v1048
        %v1050 = vmul.f32 %v1049, %v988
        %v1051 = vmul.f32 %v1049, %v989
        %v1052 = vmul.f32 %v1049, %v990
        %v1053 = vmul.f32 %v1049, %v991
        %1055 = vset.pattern.permute.xlu0 0
        %1056 = vperm.xlu0 %1055, %v1050
        %v1057 = vpop.permute.xlu0 %1056
        %1060 = vset.pattern.permute.xlu0 0
        %1061 = vperm.xlu0 %1060, %v1051
        %v1062 = vpop.permute.xlu0 %1061
        %1065 = vset.pattern.permute.xlu0 0
        %1066 = vperm.xlu0 %1065, %v1052
        %v1067 = vpop.permute.xlu0 %1066
        %1070 = vset.pattern.permute.xlu0 0
        %1071 = vperm.xlu0 %1070, %v1053
        %v1072 = vpop.permute.xlu0 %1071
        %v1074 = vmul.f32 %v1022, %v1057
        %v1075 = vmul.f32 %v1023, %v1062
        %v1076 = vmul.f32 %v1024, %v1067
        %v1077 = vmul.f32 %v1025, %v1072
        %1079 = vset.pattern.permute.xlu0 1
        %1080 = vperm.xlu0 %1079, %v988
        %v1081 = vpop.permute.xlu0 %1080
        %1084 = vset.pattern.permute.xlu0 1
        %1085 = vperm.xlu0 %1084, %v989
        %v1086 = vpop.permute.xlu0 %1085
        %1089 = vset.pattern.permute.xlu0 1
        %1090 = vperm.xlu0 %1089, %v990
        %v1091 = vpop.permute.xlu0 %1090
        %1094 = vset.pattern.permute.xlu0 1
        %1095 = vperm.xlu0 %1094, %v991
        %v1096 = vpop.permute.xlu0 %1095
        %v1098 = vadd.f32 %v1074, %v1081
        %v1099 = vadd.f32 %v1075, %v1086
        %v1100 = vadd.f32 %v1076, %v1091
        %v1101 = vadd.f32 %v1077, %v1096
        %1102 = vrot.lane.b32.xlu0 %v1098, 1
        %v1103 = vpop.permute.xlu0 %1102
        %1104 = vrot.lane.b32.xlu0 %v1099, 1
        %v1105 = vpop.permute.xlu0 %1104
        %1106 = vrot.lane.b32.xlu0 %v1100, 1
        %v1107 = vpop.permute.xlu0 %1106
        %1108 = vrot.lane.b32.xlu0 %v1101, 1
        %v1109 = vpop.permute.xlu0 %1108
        %v1110 = vmul.f32 %v1103, %v259
        %v1111 = vmul.f32 %v1105, %v259
        %v1112 = vmul.f32 %v1107, %v259
        %v1113 = vmul.f32 %v1109, %v259
        %v1114 = vpack.c.bf16 %v1111, %v1110
        %v1115 = vpack.c.bf16 %v1113, %v1112
        %v1116 = vpack.c.bf16 %v1099, %v1098
        %v1117 = vpack.c.bf16 %v1101, %v1100
        %v1120 = vunpack.c.l.b16 %v995
        %v1121 = vunpack.c.l.b16 %v996
        %v1122 = vpack.c.b16 %v1121, %v1120
        %v1124 = vsel %vm401, %v1122, 0
        %1126 = vmatprep.subr.bf16.mxu0 0
        %1127 = vmatpush1.bf16.msra.mxu0 %v1116
        %1128 = vmatprep.subr.bf16.mxu0 0
        %1129 = vmatpush1.bf16.msra.mxu0 %v1117
        %1130 = vmatprep.subr.bf16.mxu0 0
        %1131 = vmatpush1.bf16.msra.mxu0 0
        %1132 = vmatprep.subr.bf16.mxu0 0
        %1133 = vmatpush1.bf16.msra.mxu0 0
        %1134 = vmatprep.subr.bf16.mxu0 0
        %1135 = vmatpush1.bf16.msra.mxu0 0
        %1136 = vmatprep.subr.bf16.mxu0 0
        %1137 = vmatpush1.bf16.msra.mxu0 0
        %1138 = vmatprep.subr.bf16.mxu0 0
        %1139 = vmatpush1.bf16.msra.mxu0 0
        %1140 = vmatprep.subr.bf16.mxu0 0
        %1141 = vmatpush1.bf16.msra.mxu0 0
        %1142 = vmatprep.subr.bf16.mxu0 0
        %1143 = vmatpush1.bf16.msra.mxu0 0
        %1144 = vmatprep.subr.bf16.mxu0 0
        %1145 = vmatpush1.bf16.msra.mxu0 0
        %1146 = vmatprep.subr.bf16.mxu0 0
        %1147 = vmatpush1.bf16.msra.mxu0 0
        %1148 = vmatprep.subr.bf16.mxu0 0
        %1149 = vmatpush1.bf16.msra.mxu0 0
        %1150 = vmatprep.subr.bf16.mxu0 0
        %1151 = vmatpush1.bf16.msra.mxu0 0
        %1152 = vmatprep.subr.bf16.mxu0 0
        %1153 = vmatpush1.bf16.msra.mxu0 0
        %1154 = vmatprep.subr.bf16.mxu0 0
        %1155 = vmatpush1.bf16.msra.mxu0 0
        %1156 = vmatprep.subr.bf16.mxu0 0
        %1157 = vmatpush1.bf16.msra.mxu0 0
        %1158 = vmatprep.mubr.bf16.mxu0 0
        %1159 = vmatmul.mubr.bf16.gmra.mrb[0].mxu0 %v1124
        %v1160 = vpop.f32.mrb[0].mxu0
        %v1161 = vadd.f32 0.0, %v1160
        %v1162 = vpop.f32.mrb[0].mxu0
        %v1163 = vpop.f32.mrb[0].mxu0
        %v1164 = vadd.f32 0.0, %v1163
        %v1165 = vpop.f32.mrb[0].mxu0
        %1166 = vdwg.mxu0
        %v1169 = vunpack.c.l.b16 %v993
        %v1170 = vunpack.c.l.b16 %v994
        %v1171 = vpack.c.b16 %v1170, %v1169
        %v1173 = vsel %vm401, %v1171, 0
        %1175 = vmatprep.subr.bf16.mxu0 0
        %1176 = vmatpush1.bf16.msra.mxu0 %v1114
        %1177 = vmatprep.subr.bf16.mxu0 0
        %1178 = vmatpush1.bf16.msra.mxu0 %v1115
        %1179 = vmatprep.subr.bf16.mxu0 0
        %1180 = vmatpush1.bf16.msra.mxu0 0
        %1181 = vmatprep.subr.bf16.mxu0 0
        %1182 = vmatpush1.bf16.msra.mxu0 0
        %1183 = vmatprep.subr.bf16.mxu0 0
        %1184 = vmatpush1.bf16.msra.mxu0 0
        %1185 = vmatprep.subr.bf16.mxu0 0
        %1186 = vmatpush1.bf16.msra.mxu0 0
        %1187 = vmatprep.subr.bf16.mxu0 0
        %1188 = vmatpush1.bf16.msra.mxu0 0
        %1189 = vmatprep.subr.bf16.mxu0 0
        %1190 = vmatpush1.bf16.msra.mxu0 0
        %1191 = vmatprep.subr.bf16.mxu0 0
        %1192 = vmatpush1.bf16.msra.mxu0 0
        %1193 = vmatprep.subr.bf16.mxu0 0
        %1194 = vmatpush1.bf16.msra.mxu0 0
        %1195 = vmatprep.subr.bf16.mxu0 0
        %1196 = vmatpush1.bf16.msra.mxu0 0
        %1197 = vmatprep.subr.bf16.mxu0 0
        %1198 = vmatpush1.bf16.msra.mxu0 0
        %1199 = vmatprep.subr.bf16.mxu0 0
        %1200 = vmatpush1.bf16.msra.mxu0 0
        %1201 = vmatprep.subr.bf16.mxu0 0
        %1202 = vmatpush1.bf16.msra.mxu0 0
        %1203 = vmatprep.subr.bf16.mxu0 0
        %1204 = vmatpush1.bf16.msra.mxu0 0
        %1205 = vmatprep.subr.bf16.mxu0 0
        %1206 = vmatpush1.bf16.msra.mxu0 0
        %1207 = vmatprep.mubr.bf16.mxu0 0
        %1208 = vmatmul.mubr.bf16.gmra.mrb[0].mxu0 %v1173
        %v1209 = vpop.f32.mrb[0].mxu0
        %v1210 = vadd.f32 %v1161, %v1209
        %v1211 = vpop.f32.mrb[0].mxu0
        %v1212 = vpop.f32.mrb[0].mxu0
        %v1213 = vadd.f32 %v1164, %v1212
        %v1214 = vpop.f32.mrb[0].mxu0
        %1215 = vdwg.mxu0
        %1216 = vrot.lane.b32.xlu0 %v1098, 127
        %v1217 = vpop.permute.xlu0 %1216
        %1218 = vrot.lane.b32.xlu0 %v1099, 127
        %v1219 = vpop.permute.xlu0 %1218
        %1220 = vrot.lane.b32.xlu0 %v1100, 127
        %v1221 = vpop.permute.xlu0 %1220
        %1222 = vrot.lane.b32.xlu0 %v1101, 127
        %v1223 = vpop.permute.xlu0 %1222
        %v1224 = vmul.f32 %v1217, %v262
        %v1225 = vmul.f32 %v1219, %v262
        %v1226 = vmul.f32 %v1221, %v262
        %v1227 = vmul.f32 %v1223, %v262
        %v1228 = vpack.c.bf16 %v1225, %v1224
        %v1229 = vpack.c.bf16 %v1227, %v1226
        %v1232 = vunpack.c.l.b16 %v997
        %v1233 = vunpack.c.l.b16 %v998
        %v1234 = vpack.c.b16 %v1233, %v1232
        %v1236 = vsel %vm401, %v1234, 0
        %1238 = vmatprep.subr.bf16.mxu0 0
        %1239 = vmatpush1.bf16.msra.mxu0 %v1228
        %1240 = vmatprep.subr.bf16.mxu0 0
        %1241 = vmatpush1.bf16.msra.mxu0 %v1229
        %1242 = vmatprep.subr.bf16.mxu0 0
        %1243 = vmatpush1.bf16.msra.mxu0 0
        %1244 = vmatprep.subr.bf16.mxu0 0
        %1245 = vmatpush1.bf16.msra.mxu0 0
        %1246 = vmatprep.subr.bf16.mxu0 0
        %1247 = vmatpush1.bf16.msra.mxu0 0
        %1248 = vmatprep.subr.bf16.mxu0 0
        %1249 = vmatpush1.bf16.msra.mxu0 0
        %1250 = vmatprep.subr.bf16.mxu0 0
        %1251 = vmatpush1.bf16.msra.mxu0 0
        %1252 = vmatprep.subr.bf16.mxu0 0
        %1253 = vmatpush1.bf16.msra.mxu0 0
        %1254 = vmatprep.subr.bf16.mxu0 0
        %1255 = vmatpush1.bf16.msra.mxu0 0
        %1256 = vmatprep.subr.bf16.mxu0 0
        %1257 = vmatpush1.bf16.msra.mxu0 0
        %1258 = vmatprep.subr.bf16.mxu0 0
        %1259 = vmatpush1.bf16.msra.mxu0 0
        %1260 = vmatprep.subr.bf16.mxu0 0
        %1261 = vmatpush1.bf16.msra.mxu0 0
        %1262 = vmatprep.subr.bf16.mxu0 0
        %1263 = vmatpush1.bf16.msra.mxu0 0
        %1264 = vmatprep.subr.bf16.mxu0 0
        %1265 = vmatpush1.bf16.msra.mxu0 0
        %1266 = vmatprep.subr.bf16.mxu0 0
        %1267 = vmatpush1.bf16.msra.mxu0 0
        %1268 = vmatprep.subr.bf16.mxu0 0
        %1269 = vmatpush1.bf16.msra.mxu0 0
        %1270 = vmatprep.mubr.bf16.mxu0 0
        %1271 = vmatmul.mubr.bf16.gmra.mrb[0].mxu0 %v1236
        %v1272 = vpop.f32.mrb[0].mxu0
        %v1273 = vadd.f32 0.0, %v1272
        %v1274 = vpop.f32.mrb[0].mxu0
        %v1275 = vpop.f32.mrb[0].mxu0
        %v1276 = vadd.f32 0.0, %v1275
        %v1277 = vpop.f32.mrb[0].mxu0
        %1278 = vdwg.mxu0
        %v1279 = vadd.f32 %v1210, %v1273
        %v1280 = vadd.f32 %v1213, %v1276
        %1281 = vset.pattern.permute.xlu0 2
        %1282 = vperm.xlu0 %1281, %v988
        %v1283 = vpop.permute.xlu0 %1282
        %1285 = vset.pattern.permute.xlu0 2
        %1286 = vperm.xlu0 %1285, %v989
        %v1287 = vpop.permute.xlu0 %1286
        %v1289 = vadd.f32 %v1279, %v1283
        %v1290 = vadd.f32 %v1280, %v1287
        %v1291 = vxor.u32 %v1290, 2147483648
        %v1292 = vmul.f32 %v1291, 1.442695
        %v1293 = vpow.pop %v1292
        %v1294 = vadd.f32 %v1293, 1.0
        %v1295 = vrcp.pop %v1294
        %v1296 = vmul.f32 1.0, %v1295
        %v1297 = vmul.f32 %v1289, %v1296
        %1298 = vrot.lane.b32.xlu0 %v1297, 1
        %v1299 = vpop.permute.xlu0 %1298
        %v1300 = vmul.f32 %v1299, %v259
        %1301 = vset.pattern.permute.xlu0 3
        %1302 = vperm.xlu0 %1301, %v988
        %v1303 = vpop.permute.xlu0 %1302
        %v1305 = vmul.f32 %v1303, %v1300
        %1306 = vset.pattern.permute.xlu0 4
        %1307 = vperm.xlu0 %1306, %v988
        %v1308 = vpop.permute.xlu0 %1307
        %v1310 = vmul.f32 %v1308, %v1297
        %v1311 = vadd.f32 %v1305, %v1310
        %1312 = vrot.lane.b32.xlu0 %v1297, 127
        %v1313 = vpop.permute.xlu0 %1312
        %v1314 = vmul.f32 %v1313, %v262
        %1315 = vset.pattern.permute.xlu0 5
        %1316 = vperm.xlu0 %1315, %v988
        %v1317 = vpop.permute.xlu0 %1316
        %v1319 = vmul.f32 %v1317, %v1314
        %v1320 = vadd.f32 %v1311, %v1319
        %1321 = vset.pattern.permute.xlu0 6
        %1322 = vperm.xlu0 %1321, %v988
        %v1323 = vpop.permute.xlu0 %1322
        %v1325 = vadd.f32 %v1320, %v1323
        %1326 = vadd.xlane.f32.xlu0 %v1325
        %v1327 = vpop.xlane.xlu0 %1326
        %v1328 = vrot.slane %v1327, 4
        %v1329 = vadd.f32 %v1327, %v1328
        %v1330 = vrot.slane %v1329, 2
        %v1331 = vadd.f32 %v1329, %v1330
        %v1332 = vrot.slane %v1331, 1
        %v1333 = vadd.f32 %v1331, %v1332
        %v1334 = vmul.f32 %v1333, 0.0009765625
        %v1335 = vsub.f32 %v1325, %v1334
        %v1336 = vmul.f32 %v1335, %v1335
        %1337 = vadd.xlane.f32.xlu0 %v1336
        %v1338 = vpop.xlane.xlu0 %1337
        %v1339 = vrot.slane %v1338, 4
        %v1340 = vadd.f32 %v1338, %v1339
        %v1341 = vrot.slane %v1340, 2
        %v1342 = vadd.f32 %v1340, %v1341
        %v1343 = vrot.slane %v1342, 1
        %v1344 = vadd.f32 %v1342, %v1343
        %v1345 = vmul.f32 %v1344, 0.0009765625
        %v1346 = vadd.f32 %v1345, 1e-05
        %v1347 = vrsqrt.pop %v1346
        %v1348 = vmul.f32 %v1347, %v988
        %1350 = vset.pattern.permute.xlu0 7
        %1351 = vperm.xlu0 %1350, %v1348
        %v1352 = vpop.permute.xlu0 %1351
        %v1354 = vmul.f32 %v1335, %v1352
        %1355 = vset.pattern.permute.xlu0 8
        %1356 = vperm.xlu0 %1355, %v988
        %v1357 = vpop.permute.xlu0 %1356
        %v1359 = vadd.f32 %v1354, %v1357
        %v1360 = vxor.u32 %v1359, 2147483648
        %v1361 = vmul.f32 %v1360, 1.442695
        %v1362 = vpow.pop %v1361
        %v1363 = vadd.f32 %v1362, 1.0
        %v1364 = vrcp.pop %v1363
        %v1365 = vmul.f32 1.0, %v1364
        %v1366 = vmul.f32 %v1359, %v1365
        %v1367 = vpack.c.bf16 %v1366, %v1366
        %1368 = vset.pattern.permute.xlu0 9
        %1369 = vperm.xlu0 %1368, %v988
        %v1370 = vpop.permute.xlu0 %1369
        %1372 = vset.pattern.permute.xlu0 9
        %1373 = vperm.xlu0 %1372, %v989
        %v1374 = vpop.permute.xlu0 %1373
        %1376 = vset.pattern.permute.xlu0 9
        %1377 = vperm.xlu0 %1376, %v990
        %v1378 = vpop.permute.xlu0 %1377
        %1380 = vset.pattern.permute.xlu0 9
        %1381 = vperm.xlu0 %1380, %v991
        %v1382 = vpop.permute.xlu0 %1381
        %v1388 = vunpack.c.l.b16 %v1000
        %v1389 = vunpack.c.l.b16 %v1001
        %v1390 = vunpack.c.l.b16 %v1002
        %v1391 = vunpack.c.l.b16 %v1003
        %v1392 = vpack.c.b16 %v1389, %v1388
        %v1393 = vpack.c.b16 %v1391, %v1390
        %v1395 = vsel %vm673, %v1392, 0
        %v1398 = vsel %vm673, %v1393, 0
        %v1401 = vsel %vm680, %v1367, 0
        %1403 = vmatprep.subr.bf16.mxu0 0
        %1404 = vmatpush1.bf16.msra.mxu0 %v1401
        %1405 = vmatprep.subr.bf16.mxu0 0
        %1406 = vmatpush1.bf16.msra.mxu0 0
        %1407 = vmatprep.subr.bf16.mxu0 0
        %1408 = vmatpush1.bf16.msra.mxu0 0
        %1409 = vmatprep.subr.bf16.mxu0 0
        %1410 = vmatpush1.bf16.msra.mxu0 0
        %1411 = vmatprep.subr.bf16.mxu0 0
        %1412 = vmatpush1.bf16.msra.mxu0 0
        %1413 = vmatprep.subr.bf16.mxu0 0
        %1414 = vmatpush1.bf16.msra.mxu0 0
        %1415 = vmatprep.subr.bf16.mxu0 0
        %1416 = vmatpush1.bf16.msra.mxu0 0
        %1417 = vmatprep.subr.bf16.mxu0 0
        %1418 = vmatpush1.bf16.msra.mxu0 0
        %1419 = vmatprep.subr.bf16.mxu0 0
        %1420 = vmatpush1.bf16.msra.mxu0 0
        %1421 = vmatprep.subr.bf16.mxu0 0
        %1422 = vmatpush1.bf16.msra.mxu0 0
        %1423 = vmatprep.subr.bf16.mxu0 0
        %1424 = vmatpush1.bf16.msra.mxu0 0
        %1425 = vmatprep.subr.bf16.mxu0 0
        %1426 = vmatpush1.bf16.msra.mxu0 0
        %1427 = vmatprep.subr.bf16.mxu0 0
        %1428 = vmatpush1.bf16.msra.mxu0 0
        %1429 = vmatprep.subr.bf16.mxu0 0
        %1430 = vmatpush1.bf16.msra.mxu0 0
        %1431 = vmatprep.subr.bf16.mxu0 0
        %1432 = vmatpush1.bf16.msra.mxu0 0
        %1433 = vmatprep.subr.bf16.mxu0 0
        %1434 = vmatpush1.bf16.msra.mxu0 0
        %1435 = vmatprep.mubr.bf16.mxu0 0
        %1436 = vmatmul.mubr.bf16.gmra.mrb[0].mxu0 %v1395
        %v1437 = vpop.f32.mrb[0].mxu0
        %v1438 = vadd.f32 %v1370, %v1437
        %v1439 = vpop.f32.mrb[0].mxu0
        %v1440 = vpop.f32.mrb[0].mxu0
        %v1441 = vadd.f32 %v1374, %v1440
        %v1442 = vpop.f32.mrb[0].mxu0
        %1443 = vmatprep.mubr.bf16.mxu0 0
        %1444 = vmatmul.mubr.bf16.gmra.mrb[0].mxu0 %v1398
        %v1445 = vpop.f32.mrb[0].mxu0
        %v1446 = vadd.f32 %v1378, %v1445
        %v1447 = vpop.f32.mrb[0].mxu0
        %v1448 = vpop.f32.mrb[0].mxu0
        %v1449 = vadd.f32 %v1382, %v1448
        %v1450 = vpop.f32.mrb[0].mxu0
        %1451 = vdwg.mxu0
        %1452 = vadd.xlane.f32.xlu0 %v1438
        %v1453 = vpop.xlane.xlu0 %1452
        %1454 = vadd.xlane.f32.xlu0 %v1441
        %v1455 = vpop.xlane.xlu0 %1454
        %1456 = vadd.xlane.f32.xlu0 %v1446
        %v1457 = vpop.xlane.xlu0 %1456
        %1458 = vadd.xlane.f32.xlu0 %v1449
        %v1459 = vpop.xlane.xlu0 %1458
        %v1460 = vmul.f32 %v1453, 0.0078125
        %v1461 = vmul.f32 %v1455, 0.0078125
        %v1462 = vmul.f32 %v1457, 0.0078125
        %v1463 = vmul.f32 %v1459, 0.0078125
        %1464 = vmatprep.subr.mxu0 0.0
        %1465 = vmatpush1.msra.mxu0 %v1460
        %1466 = vmatprep.subr.mxu0 0.0
        %1467 = vmatpush1.msra.mxu0 %v1461
        %1468 = vmatprep.subr.mxu0 0.0
        %1469 = vmatpush1.msra.mxu0 %v1462
        %1470 = vmatprep.subr.mxu0 0.0
        %1471 = vmatpush1.msra.mxu0 %v1463
        %1472 = vmatprep.subr.mxu0 0.0
        %1473 = vmatpush1.msra.mxu0 0.0
        %1474 = vmatprep.subr.mxu0 0.0
        %1475 = vmatpush1.msra.mxu0 0.0
        %1476 = vmatprep.subr.mxu0 0.0
        %1477 = vmatpush1.msra.mxu0 0.0
        %1478 = vmatprep.subr.mxu0 0.0
        %1479 = vmatpush1.msra.mxu0 0.0
        %1480 = vmatprep.subr.mxu0 0.0
        %1481 = vmatpush1.msra.mxu0 0.0
        %1482 = vmatprep.subr.mxu0 0.0
        %1483 = vmatpush1.msra.mxu0 0.0
        %1484 = vmatprep.subr.mxu0 0.0
        %1485 = vmatpush1.msra.mxu0 0.0
        %1486 = vmatprep.subr.mxu0 0.0
        %1487 = vmatpush1.msra.mxu0 0.0
        %1488 = vmatprep.subr.mxu0 0.0
        %1489 = vmatpush1.msra.mxu0 0.0
        %1490 = vmatprep.subr.mxu0 0.0
        %1491 = vmatpush1.msra.mxu0 0.0
        %1492 = vmatprep.subr.mxu0 0.0
        %1493 = vmatpush1.msra.mxu0 0.0
        %1494 = vmatprep.subr.mxu0 0.0
        %1495 = vmatpush1.msra.mxu0 0.0
        %1496 = vmatprep.subr.mxu0 0.0
        %1497 = vmatpush1.msra.mxu0 0.0
        %1498 = vmatprep.subr.mxu0 0.0
        %1499 = vmatpush1.msra.mxu0 0.0
        %1500 = vmatprep.subr.mxu0 0.0
        %1501 = vmatpush1.msra.mxu0 0.0
        %1502 = vmatprep.subr.mxu0 0.0
        %1503 = vmatpush1.msra.mxu0 0.0
        %1504 = vmatprep.subr.mxu0 0.0
        %1505 = vmatpush1.msra.mxu0 0.0
        %1506 = vmatprep.subr.mxu0 0.0
        %1507 = vmatpush1.msra.mxu0 0.0
        %1508 = vmatprep.subr.mxu0 0.0
        %1509 = vmatpush1.msra.mxu0 0.0
        %1510 = vmatprep.subr.mxu0 0.0
        %1511 = vmatpush1.msra.mxu0 0.0
        %1512 = vmatprep.subr.mxu0 0.0
        %1513 = vmatpush1.msra.mxu0 0.0
        %1514 = vmatprep.subr.mxu0 0.0
        %1515 = vmatpush1.msra.mxu0 0.0
        %1516 = vmatprep.subr.mxu0 0.0
        %1517 = vmatpush1.msra.mxu0 0.0
        %1518 = vmatprep.subr.mxu0 0.0
        %1519 = vmatpush1.msra.mxu0 0.0
        %1520 = vmatprep.subr.mxu0 0.0
        %1521 = vmatpush1.msra.mxu0 0.0
        %1522 = vmatprep.subr.mxu0 0.0
        %1523 = vmatpush1.msra.mxu0 0.0
        %1524 = vmatprep.subr.mxu0 0.0
        %1525 = vmatpush1.msra.mxu0 0.0
        %1526 = vmatprep.subr.mxu0 0.0
        %1527 = vmatpush1.msra.mxu0 0.0
        %1528 = vmatprep.mubr.f32.mxu0 0.0
        %1529 = vmatmul.mubr.f32.gmra.mrb[0].mxu0 %v749
        %v1530 = vpop.f32.mrb[0].mxu0
        %v1531 = vadd.f32 %v747, %v1530
        %v1532 = vpop.f32.mrb[0].mxu0
        %1533 = vdwg.mxu0
        %v1534 = vmax.f32 %v1531, 0.0
        %v1536 = vsel %vm680, %v1534, 0
        %1538 = vmatprep.subr.mxu0 0.0
        %1539 = vmatpush1.msra.mxu0 %v1536
        %1540 = vmatprep.subr.mxu0 0.0
        %1541 = vmatpush1.msra.mxu0 0.0
        %1542 = vmatprep.subr.mxu0 0.0
        %1543 = vmatpush1.msra.mxu0 0.0
        %1544 = vmatprep.subr.mxu0 0.0
        %1545 = vmatpush1.msra.mxu0 0.0
        %1546 = vmatprep.subr.mxu0 0.0
        %1547 = vmatpush1.msra.mxu0 0.0
        %1548 = vmatprep.subr.mxu0 0.0
        %1549 = vmatpush1.msra.mxu0 0.0
        %1550 = vmatprep.subr.mxu0 0.0
        %1551 = vmatpush1.msra.mxu0 0.0
        %1552 = vmatprep.subr.mxu0 0.0
        %1553 = vmatpush1.msra.mxu0 0.0
        %1554 = vmatprep.subr.mxu0 0.0
        %1555 = vmatpush1.msra.mxu0 0.0
        %1556 = vmatprep.subr.mxu0 0.0
        %1557 = vmatpush1.msra.mxu0 0.0
        %1558 = vmatprep.subr.mxu0 0.0
        %1559 = vmatpush1.msra.mxu0 0.0
        %1560 = vmatprep.subr.mxu0 0.0
        %1561 = vmatpush1.msra.mxu0 0.0
        %1562 = vmatprep.subr.mxu0 0.0
        %1563 = vmatpush1.msra.mxu0 0.0
        %1564 = vmatprep.subr.mxu0 0.0
        %1565 = vmatpush1.msra.mxu0 0.0
        %1566 = vmatprep.subr.mxu0 0.0
        %1567 = vmatpush1.msra.mxu0 0.0
        %1568 = vmatprep.subr.mxu0 0.0
        %1569 = vmatpush1.msra.mxu0 0.0
        %1570 = vmatprep.subr.mxu0 0.0
        %1571 = vmatpush1.msra.mxu0 0.0
        %1572 = vmatprep.subr.mxu0 0.0
        %1573 = vmatpush1.msra.mxu0 0.0
        %1574 = vmatprep.subr.mxu0 0.0
        %1575 = vmatpush1.msra.mxu0 0.0
        %1576 = vmatprep.subr.mxu0 0.0
        %1577 = vmatpush1.msra.mxu0 0.0
        %1578 = vmatprep.subr.mxu0 0.0
        %1579 = vmatpush1.msra.mxu0 0.0
        %1580 = vmatprep.subr.mxu0 0.0
        %1581 = vmatpush1.msra.mxu0 0.0
        %1582 = vmatprep.subr.mxu0 0.0
        %1583 = vmatpush1.msra.mxu0 0.0
        %1584 = vmatprep.subr.mxu0 0.0
        %1585 = vmatpush1.msra.mxu0 0.0
        %1586 = vmatprep.subr.mxu0 0.0
        %1587 = vmatpush1.msra.mxu0 0.0
        %1588 = vmatprep.subr.mxu0 0.0
        %1589 = vmatpush1.msra.mxu0 0.0
        %1590 = vmatprep.subr.mxu0 0.0
        %1591 = vmatpush1.msra.mxu0 0.0
        %1592 = vmatprep.subr.mxu0 0.0
        %1593 = vmatpush1.msra.mxu0 0.0
        %1594 = vmatprep.subr.mxu0 0.0
        %1595 = vmatpush1.msra.mxu0 0.0
        %1596 = vmatprep.subr.mxu0 0.0
        %1597 = vmatpush1.msra.mxu0 0.0
        %1598 = vmatprep.subr.mxu0 0.0
        %1599 = vmatpush1.msra.mxu0 0.0
        %1600 = vmatprep.subr.mxu0 0.0
        %1601 = vmatpush1.msra.mxu0 0.0
        %1602 = vmatprep.mubr.f32.mxu0 0.0
        %1603 = vmatmul.mubr.f32.gmra.mrb[0].mxu0 %v839
        %v1604 = vpop.f32.mrb[0].mxu0
        %v1605 = vadd.f32 %v827, %v1604
        %v1606 = vpop.f32.mrb[0].mxu0
        %1607 = vmatprep.mubr.f32.mxu0 0.0
        %1608 = vmatmul.mubr.f32.gmra.mrb[0].mxu0 %v841
        %v1609 = vpop.f32.mrb[0].mxu0
        %v1610 = vadd.f32 %v829, %v1609
        %v1611 = vpop.f32.mrb[0].mxu0
        %1612 = vmatprep.mubr.f32.mxu0 0.0
        %1613 = vmatmul.mubr.f32.gmra.mrb[0].mxu0 %v843
        %v1614 = vpop.f32.mrb[0].mxu0
        %v1615 = vadd.f32 %v831, %v1614
        %v1616 = vpop.f32.mrb[0].mxu0
        %1617 = vmatprep.mubr.f32.mxu0 0.0
        %1618 = vmatmul.mubr.f32.gmra.mrb[0].mxu0 %v845
        %v1619 = vpop.f32.mrb[0].mxu0
        %v1620 = vadd.f32 %v833, %v1619
        %v1621 = vpop.f32.mrb[0].mxu0
        %1622 = vdwg.mxu0
        %v1623 = vxor.u32 %v1605, 2147483648
        %v1624 = vxor.u32 %v1610, 2147483648
        %v1625 = vxor.u32 %v1615, 2147483648
        %v1626 = vxor.u32 %v1620, 2147483648
        %v1627 = vmul.f32 %v1623, 1.442695
        %v1628 = vpow.pop %v1627
        %v1629 = vmul.f32 %v1624, 1.442695
        %v1630 = vpow.pop %v1629
        %v1631 = vmul.f32 %v1625, 1.442695
        %v1632 = vpow.pop %v1631
        %v1633 = vmul.f32 %v1626, 1.442695
        %v1634 = vpow.pop %v1633
        %v1635 = vadd.f32 %v1628, 1.0
        %v1636 = vadd.f32 %v1630, 1.0
        %v1637 = vadd.f32 %v1632, 1.0
        %v1638 = vadd.f32 %v1634, 1.0
        %v1639 = vrcp.pop %v1635
        %v1640 = vmul.f32 1.0, %v1639
        %v1641 = vrcp.pop %v1636
        %v1642 = vmul.f32 1.0, %v1641
        %v1643 = vrcp.pop %v1637
        %v1644 = vmul.f32 1.0, %v1643
        %v1645 = vrcp.pop %v1638
        %v1646 = vmul.f32 1.0, %v1645
        %1648 = vset.pattern.permute.xlu0 0
        %1649 = vperm.xlu0 %1648, %v1640
        %v1650 = vpop.permute.xlu0 %1649
        %1653 = vset.pattern.permute.xlu0 0
        %1654 = vperm.xlu0 %1653, %v1642
        %v1655 = vpop.permute.xlu0 %1654
        %1658 = vset.pattern.permute.xlu0 0
        %1659 = vperm.xlu0 %1658, %v1644
        %v1660 = vpop.permute.xlu0 %1659
        %1663 = vset.pattern.permute.xlu0 0
        %1664 = vperm.xlu0 %1663, %v1646
        %v1665 = vpop.permute.xlu0 %1664
        %v1667 = vmul.f32 %v1438, %v1650
        %v1668 = vmul.f32 %v1441, %v1655
        %v1669 = vmul.f32 %v1446, %v1660
        %v1670 = vmul.f32 %v1449, %v1665
        %v1671 = vadd.f32 %v983, %v1667
        %v1672 = vadd.f32 %v984, %v1668
        %v1673 = vadd.f32 %v985, %v1669
        %v1674 = vadd.f32 %v986, %v1670
        %1675 = vst [vmem:[%s244] sm:$0xff] %v1671
        %1676 = vst [vmem:[%s244 + $0x8] sm:$0xff] %v1672
        %1677 = vst [vmem:[%s244 + $0x10] sm:$0xff] %v1673
        %1678 = vst [vmem:[%s244 + $0x18] sm:$0xff] %v1674
        %s1679 = sand.u32 %s159, 1
        %s1680 = scalar_lea.sflag [#allocation3], %s1679
        %s1681 = sand.u32 %s159, 1
        %s1682 = smul.addr %s1681, 32
        %s1683 = scalar_lea.vmem [#allocation2], %s1682
        // Predicated region
        $region45: #{tpu_custom_call.1} parent=43 // pred_check
          %p1684 = pneg %p169
        $region46: #{tpu_custom_call.1} parent=43 // pred_check_branch
          %1686 = sbr.rel (%p1684) target = $region48
        $region47: #{tpu_custom_call.1} parent=43 // pred_region
          %s1688 = ssub.s32 512, 512
          %1689 = vsyncadd %s1680, %s1688
          %s1690 = smul.addr %s20, 4
          %s1691 = smul.addr %s1690, 128
          %s1692 = scalar_lea.hbm %s6, %s1691
          %s1693 = sshll.u32 %s1683, 4
          %s1694 = int_to_ptr.vmem [resolvable:$true] %s1693
          %1699 = dma.vmem_to_hbm [thread:$0]  %s1694, 512, %s1692, %s1680, 128, 128, 8
        $region48: #{tpu_custom_call.1} parent=43 // pred_fallthru
          _
      $region44: #{tpu_custom_call.1} parent=5 // pred_fallthru
        _
      %p1700 = scmp.le.s32.totalorder 2, %s15
      // Predicated region
      $region49: #{tpu_custom_call.1} parent=5 // pred_check
        %p1701 = pneg %p1700
      $region50: #{tpu_custom_call.1} parent=5 // pred_check_branch
        %1703 = sbr.rel (%p1701) target = $region52
      $region51: #{tpu_custom_call.1} parent=5 // pred_region
        %s1704 = ssub.s32 %s15, 2
        // Predicated region
        $region53: #{tpu_custom_call.1} parent=51 // pred_check
          %p1705 = pneg %p175
        $region54: #{tpu_custom_call.1} parent=51 // pred_check_branch
          %1707 = sbr.rel (%p1705) target = $region56
        $region55: #{tpu_custom_call.1} parent=51 // pred_region
          %s1708 = sand.u32 %s160, 1
          %s1709 = scalar_lea.sflag [#allocation3], %s1708
          %s1710 = sand.u32 %s160, 1
          %s1711 = smul.addr %s1710, 32
          %s1712 = scalar_lea.vmem [#allocation2], %s1711
          %1713 = dma.done %s1709, 512
        $region56: #{tpu_custom_call.1} parent=51 // pred_fallthru
          _
      $region52: #{tpu_custom_call.1} parent=5 // pred_fallthru
        _
    $region6: #{tpu_custom_call.1} parent=1 // loop_footer
      %s19 = sadd.s32 1, %s15
    $region7: #{tpu_custom_call.1} parent=1 // loop_footer_branch
      %14 = sbr.rel target = $region3
    $region8: #{tpu_custom_call.1} parent=1 // loop_exit
      _
    %1714 = vsyncpa [#allocation3], 1
    %s1715 = scalar_lea.sflag [#allocation3], 1
    %1716 = vsyncpa %s1715, 1

</llo_original>
